<compile_context>
chip_gen: v6e
topology: v6e:2x2x1
jax: 0.10.0
libtpu: 0.0.40
codegen_flags: <defaults>
</compile_context>

<pallas_src>
import numpy as np
import jax
import jax.numpy as jnp
from jax.experimental import pallas as pl
from jax.experimental.pallas import tpu as pltpu


def _round_up(x, m):
    return ((x + m - 1) // m) * m


def gru_codeemb_kernel(tmax_ref, x_ref, len_ref, wih_ref, whh_ref, bih_ref,
                       bhh_ref, wout_ref, bout_ref, out_ref, gi_scr, h_scr):
    # tmax_ref: SMEM (num_tiles,) int32  per-batch-tile max valid length (prefetched)
    # x_ref:    (T_pad, BB, E) bf16      time-major embedded inputs for this tile
    # len_ref:  (BB, 1) int32            valid lengths
    # wih_ref:  (E, 3Hp) bf16  gate order [r, z, n], each gate zero-padded to Hp lanes
    # whh_ref:  (Hp, 3Hp) bf16           bih/bhh: (1, 3Hp) f32
    # wout_ref: (Hp, Op) bf16            bout: (1, Op) f32
    # out_ref:  (BB, Op) f32
    # gi_scr:   (TC, BB, 3Hp) f32        per-chunk hoisted input projection
    # h_scr:    (BB, Hp) f32             hidden state carried across chunks
    T_pad, BB, E = x_ref.shape
    TC = gi_scr.shape[0]
    Hp = whh_ref.shape[0]
    H3 = 3 * Hp

    len_v = len_ref[...]              # (BB, 1), loaded once for the whole recurrence
    bih = bih_ref[...]                # (1, 3Hp) f32
    bhh = bhh_ref[...]                # (1, 3Hp) f32

    h_scr[...] = jnp.zeros_like(h_scr)

    # Resource-aware unroll: full unroll of the chunk recurrence only when the
    # per-step live set (~8*BB*Hp f32: h, gi, gh, gates) fits well within the
    # 64 x 4 KiB vreg file; otherwise a small partial unroll (avoids spill cliff).
    unroll = TC if (8 * BB * Hp * 4) <= (128 * 1024) else min(TC, 2)

    # Only iterate over time chunks that contain at least one valid step for this
    # tile: dead padded steps past max(length) are skipped entirely.
    t_max = tmax_ref[pl.program_id(0)]
    n_chunks = pl.cdiv(t_max, TC)

    @pl.loop(0, n_chunks)
    def _chunk(c):
        t0 = pl.multiple_of(c * TC, TC)

        # Hoisted input projection for this chunk: one (TC*BB, E) x (E, 3Hp) bf16
        # MXU matmul (f32 accumulation), off the serial critical path.  BB is a
        # multiple of 8, so the reshape is layout-preserving.
        xc = x_ref[pl.ds(t0, TC), :, :].reshape(TC * BB, E)
        gi_scr[...] = (jnp.dot(xc, wih_ref[...],
                               preferred_element_type=jnp.float32)
                       + bih).reshape(TC, BB, H3)

        def step(s, h):
            t = t0 + s
            gi = gi_scr[s]                                     # (BB, 3Hp) f32
            # Recurrent matmul: bf16 operands, f32 accumulation (MXU-native).
            # NOTE: a further lever is keeping W_hh stationary on the MXU across
            # steps via pltpu.matmul_push_rhs/acc_lhs/pop per 128-lane gate block;
            # left out here (staging-register capacity must be verified per chip).
            gh = jnp.dot(h.astype(jnp.bfloat16), whh_ref[...],
                         preferred_element_type=jnp.float32) + bhh
            # Gate slices are whole 128-lane slabs (Hp is a multiple of 128).
            r = jax.nn.sigmoid(gi[:, :Hp] + gh[:, :Hp])
            z = jax.nn.sigmoid(gi[:, Hp:2 * Hp] + gh[:, Hp:2 * Hp])
            n = jnp.tanh(gi[:, 2 * Hp:] + r * gh[:, 2 * Hp:])
            h_new = (1.0 - z) * n + z * h
            # Freeze hidden state once t >= length (pack_padded_sequence semantics:
            # the final hidden equals output_seq[i, lengths_i - 1]).
            return jnp.where(t < len_v, h_new, h)

        h_scr[...] = jax.lax.fori_loop(0, TC, step, h_scr[...], unroll=unroll)

    # Fused output Linear; Op is a multiple of 128 -> lane-dense unmasked stores.
    out_ref[...] = (jnp.dot(h_scr[...].astype(jnp.bfloat16), wout_ref[...],
                            preferred_element_type=jnp.float32)
                    + bout_ref[...]).astype(out_ref.dtype)


def codeemb_forward(x_ids, lengths, params):
    """x_ids: (B, T) int32 token ids; lengths: (B,) int32 valid lengths (1 <= len <= T)."""
    emb_tbl = params["embedding"]          # (V, E), row 0 zeros (padding_idx=0)
    W_ih = params["W_ih"]                  # (E, 3H)  gates [r, z, n]
    W_hh = params["W_hh"]                  # (H, 3H)
    b_ih = params["b_ih"]                  # (1, 3H)
    b_hh = params["b_hh"]                  # (1, 3H)
    W_out = params["W_out"]                # (H, O)
    b_out = params["b_out"]                # (1, O)

    B, T = x_ids.shape
    E = emb_tbl.shape[1]
    H = W_hh.shape[0]
    O = W_out.shape[1]

    # --- TPU-friendly padding / tiling -----------------------------------------
    Hp = _round_up(H, 128)            # lane-aligned gates
    Op = _round_up(O, 128)            # lane-dense output stores
    H3 = 3 * Hp

    Bp = _round_up(B, 8)              # sublane-aligned batch
    # Batch tile: fill the 256-row MXU M dim when the batch is large; otherwise split
    # into >=2 tiles so dimension_semantics=("parallel",) can shard across both
    # TensorCores on v7x (single-TC chips just see one extra cheap grid step).
    if Bp <= 16:
        BB = Bp
    else:
        BB = min(256, _round_up(-(-Bp // 2), 8))
    Bp = _round_up(Bp, BB)
    num_tiles = Bp // BB

    # Time-chunk for the hoisted input projection: bounds gi scratch to ~6 MiB so
    # large T*BB*Hp fits v7x's 64 MiB VMEM (32 MiB default scoped) and v5e's 16 MiB
    # default scoped limit.
    gi_step_bytes = BB * H3 * 4
    TC = max(1, min(T, (6 << 20) // gi_step_bytes))
    T_pad = _round_up(T, TC)

    def pad_gates(w, dtype):          # (in, 3H) -> (in, 3Hp), zero-fill each gate
        i = w.shape[0]
        return jnp.pad(w.reshape(i, 3, H),
                       ((0, 0), (0, 0), (0, Hp - H))).reshape(i, H3).astype(dtype)

    # Weights in bf16 (MXU-native operands, halved DMA bytes); biases stay f32 and
    # are added to the f32 accumulators.
    W_ih_p = pad_gates(W_ih, jnp.bfloat16)                                   # (E, 3Hp)
    W_hh_p = jnp.pad(pad_gates(W_hh, jnp.float32),
                     ((0, Hp - H), (0, 0))).astype(jnp.bfloat16)             # (Hp, 3Hp)
    b_ih_p = pad_gates(b_ih, jnp.float32)                                    # (1, 3Hp)
    b_hh_p = pad_gates(b_hh, jnp.float32)                                    # (1, 3Hp)
    W_out_p = jnp.pad(W_out, ((0, Hp - H), (0, Op - O))).astype(jnp.bfloat16)  # (Hp, Op)
    b_out_p = jnp.pad(b_out, ((0, 0), (0, Op - O)))                          # (1, Op) f32

    x_ids_p = jnp.pad(x_ids.astype(jnp.int32), ((0, Bp - B), (0, 0)))
    len_pad = jnp.pad(lengths.astype(jnp.int32), (0, Bp - B))
    len_col = len_pad.reshape(Bp, 1)
    # Per-tile max length, scalar-prefetched into SMEM (bounds the recurrence loop).
    tile_tmax = jnp.clip(len_pad.reshape(num_tiles, BB).max(axis=1),
                         0, T_pad).astype(jnp.int32)

    # Embedding lookup emitted directly in time-major layout (only the tiny int id
    # matrix is transposed, not the embedded activations); x shipped as bf16.
    x_tm = jnp.take(emb_tbl.astype(jnp.bfloat16), x_ids_p.T, axis=0)  # (T, Bp, E)
    if T_pad > T:
        x_tm = jnp.pad(x_tm, ((0, T_pad - T), (0, 0), (0, 0)))

    # --- VMEM budget & cost hint -----------------------------------------------
    vmem_need = (TC * BB * H3 * 4                      # gi scratch (f32)
                 + BB * Hp * 4                         # h scratch (f32)
                 + 2 * T_pad * BB * E * 2              # x double-buffer (bf16)
                 + 2 * BB * 4                          # lengths
                 + 2 * BB * Op * 4                     # out double-buffer
                 + 2 * (E * H3 * 2 + Hp * H3 * 2 + Hp * Op * 2
                        + 2 * H3 * 4 + Op * 4))        # weights/biases (double-buffered)
    vmem_limit = int(min(max(int(1.4 * vmem_need) + (2 << 20), 32 << 20), 48 << 20))

    flops = (2 * T_pad * Bp * E * H3          # input projection
             + 2 * T_pad * Bp * Hp * H3       # recurrent matmuls
             + 2 * Bp * Hp * Op)              # output head
    transcendentals = 3 * T_pad * Bp * Hp     # 2x sigmoid + tanh per step/unit
    bytes_accessed = int(T_pad * Bp * E * 2 + Bp * 4 + num_tiles * 4
                         + (E * H3 + Hp * H3 + Hp * Op) * 2
                         + (2 * H3 + Op) * 4 + Bp * Op * 4)
    cost = pl.CostEstimate(flops=int(flops), transcendentals=int(transcendentals),
                           bytes_accessed=bytes_accessed)

    grid_spec = pltpu.PrefetchScalarGridSpec(
        num_scalar_prefetch=1,                               # per-tile max lengths
        grid=(num_tiles,),                                   # independent batch tiles
        in_specs=[
            pl.BlockSpec((T_pad, BB, E), lambda b, tmax: (0, b, 0)),  # x (time-major)
            pl.BlockSpec((BB, 1), lambda b, tmax: (b, 0)),            # lengths
            pl.BlockSpec((E, H3), lambda b, tmax: (0, 0)),            # W_ih
            pl.BlockSpec((Hp, H3), lambda b, tmax: (0, 0)),           # W_hh
            pl.BlockSpec((1, H3), lambda b, tmax: (0, 0)),            # b_ih
            pl.BlockSpec((1, H3), lambda b, tmax: (0, 0)),            # b_hh
            pl.BlockSpec((Hp, Op), lambda b, tmax: (0, 0)),           # W_out
            pl.BlockSpec((1, Op), lambda b, tmax: (0, 0)),            # b_out
        ],
        out_specs=pl.BlockSpec((BB, Op), lambda b, tmax: (b, 0)),
        scratch_shapes=[pltpu.VMEM((TC, BB, H3), jnp.float32),        # gi chunk
                        pltpu.VMEM((BB, Hp), jnp.float32)],           # hidden state
    )

    out_p = pl.pallas_call(
        gru_codeemb_kernel,
        out_shape=jax.ShapeDtypeStruct((Bp, Op), jnp.float32),
        grid_spec=grid_spec,
        compiler_params=pltpu.CompilerParams(
            dimension_semantics=("parallel",),    # batch tiles -> both TCs on v7x
            vmem_limit_bytes=vmem_limit),
        cost_estimate=cost,
    )(tile_tmax, x_tm, len_col, W_ih_p, W_hh_p, b_ih_p, b_hh_p, W_out_p, b_out_p)

    return out_p[:B, :O]


def codeemb_reference(x_ids, lengths, params):
    """Pure-JAX f32 reference replicating PyTorch CodeEmb.forward semantics."""
    emb = jnp.take(params["embedding"], x_ids, axis=0)   # (B, T, E)
    W_ih, W_hh = params["W_ih"], params["W_hh"]
    b_ih, b_hh = params["b_ih"], params["b_hh"]
    B, T, E = emb.shape
    H = W_hh.shape[0]

    def step(h, x_t):
        gi = x_t @ W_ih + b_ih
        gh = h @ W_hh + b_hh
        r = jax.nn.sigmoid(gi[:, :H] + gh[:, :H])
        z = jax.nn.sigmoid(gi[:, H:2 * H] + gh[:, H:2 * H])
        n = jnp.tanh(gi[:, 2 * H:] + r * gh[:, 2 * H:])
        h_new = (1.0 - z) * n + z * h
        return h_new, h_new

    _, outs = jax.lax.scan(step, jnp.zeros((B, H), jnp.float32),
                           jnp.transpose(emb, (1, 0, 2)))
    outs = jnp.transpose(outs, (1, 0, 2))                 # (B, T, H)
    last = outs[jnp.arange(B), lengths - 1]               # output_seq[i, lengths-1]
    return last @ params["W_out"] + params["b_out"]


def init_params(key, vocab_size, embedding_dim, hidden_dim, output_size):
    ks = jax.random.split(key, 7)
    s_gru = 1.0 / np.sqrt(hidden_dim)
    emb = 0.1 * jax.random.normal(ks[0], (vocab_size, embedding_dim), jnp.float32)
    emb = emb.at[0].set(0.0)  # padding_idx=0
    params = {
        "embedding": emb,
        # PyTorch GRU weight_ih_l0 is (3H, E); store transposed (E, 3H), gates [r,z,n]
        "W_ih": jax.random.uniform(ks[1], (embedding_dim, 3 * hidden_dim),
                                   jnp.float32, -s_gru, s_gru),
        "W_hh": jax.random.uniform(ks[2], (hidden_dim, 3 * hidden_dim),
                                   jnp.float32, -s_gru, s_gru),
        "b_ih": jax.random.uniform(ks[3], (1, 3 * hidden_dim),
                                   jnp.float32, -s_gru, s_gru),
        "b_hh": jax.random.uniform(ks[4], (1, 3 * hidden_dim),
                                   jnp.float32, -s_gru, s_gru),
        "W_out": jax.random.uniform(ks[5], (hidden_dim, output_size),
                                    jnp.float32, -s_gru, s_gru),
        "b_out": jax.random.uniform(ks[6], (1, output_size),
                                    jnp.float32, -s_gru, s_gru),
    }
    return params


if __name__ == "__main__":
    # small shapes consistent with CodeEmb: batch=2, seq=8, vocab=20,
    # embedding_dim=32, hidden_dim=32, output_size=4
    B, T, V, E, H, O = 2, 8, 20, 32, 32, 4

    key = jax.random.PRNGKey(0)
    kp, kx = jax.random.split(key)
    params = init_params(kp, V, E, H, O)

    # lengths must satisfy 1 <= length <= T (same requirement as pack_padded_sequence)
    lengths = jnp.array([8, 5], dtype=jnp.int32)          # (B,)
    # token ids in [1, V), padded with 0 beyond each length
    raw_ids = jax.random.randint(kx, (B, T), 1, V, dtype=jnp.int32)
    t_idx = jnp.arange(T)[None, :]
    x_ids = jnp.where(t_idx < lengths[:, None], raw_ids, 0)

    out = codeemb_forward(x_ids, lengths, params)
    out = jax.block_until_ready(out)

    ref = codeemb_reference(x_ids, lengths, params)
    # bf16 MXU operands (f32 accumulation) in the kernel -> relaxed tolerance vs the
    # f32 reference, as called out in the performance review.
    np.testing.assert_allclose(np.asarray(out), np.asarray(ref),
                               rtol=2e-2, atol=2e-2)
    assert out.shape == (B, O)
    print("KERNEL_OK")
</pallas_src>

<mosaic_0001>
module attributes {stable_mosaic.version = 11 : i64} {
  func.func @gru_codeemb_kernel(%arg0: i32, %arg1: memref<1xi32, #tpu.memory_space<smem>>, %arg2: memref<8x8x32xbf16, #tpu.memory_space<vmem>>, %arg3: memref<8x1xi32, #tpu.memory_space<vmem>>, %arg4: memref<32x384xbf16, #tpu.memory_space<vmem>>, %arg5: memref<128x384xbf16, #tpu.memory_space<vmem>>, %arg6: memref<1x384xf32, #tpu.memory_space<vmem>>, %arg7: memref<1x384xf32, #tpu.memory_space<vmem>>, %arg8: memref<128x128xbf16, #tpu.memory_space<vmem>>, %arg9: memref<1x128xf32, #tpu.memory_space<vmem>>, %arg10: memref<8x128xf32, #tpu.memory_space<vmem>>, %arg11: memref<8x8x384xf32, #tpu.memory_space<vmem>>, %arg12: memref<8x128xf32, #tpu.memory_space<vmem>>) attributes {dimension_semantics = [#tpu.dimension_semantics<parallel>], iteration_bounds = array<i64: 1>, scalar_prefetch = 1 : i64, scratch_operands = 2 : i64, tpu.core_type = #tpu.core_type<tc>, window_params = [{transform_indices = @transform_0, window_bounds = array<i64: 8, 8, 32>}, {transform_indices = @transform_1, window_bounds = array<i64: 8, 1>}, {pipeline_mode = #tpu.pipeline_mode<synchronous>, transform_indices = @transform_2, window_bounds = array<i64: 32, 384>}, {pipeline_mode = #tpu.pipeline_mode<synchronous>, transform_indices = @transform_3, window_bounds = array<i64: 128, 384>}, {pipeline_mode = #tpu.pipeline_mode<synchronous>, transform_indices = @transform_4, window_bounds = array<i64: 1, 384>}, {pipeline_mode = #tpu.pipeline_mode<synchronous>, transform_indices = @transform_5, window_bounds = array<i64: 1, 384>}, {pipeline_mode = #tpu.pipeline_mode<synchronous>, transform_indices = @transform_6, window_bounds = array<i64: 128, 128>}, {pipeline_mode = #tpu.pipeline_mode<synchronous>, transform_indices = @transform_7, window_bounds = array<i64: 1, 128>}, {transform_indices = @transform_8, window_bounds = array<i64: 8, 128>}]} {
    %c0 = arith.constant 0 : index
    %c0_0 = arith.constant 0 : index
    %0 = vector.load %arg3[%c0, %c0_0] : memref<8x1xi32, #tpu.memory_space<vmem>>, vector<8x1xi32>
    %c0_1 = arith.constant 0 : index
    %c0_2 = arith.constant 0 : index
    %1 = vector.load %arg6[%c0_1, %c0_2] : memref<1x384xf32, #tpu.memory_space<vmem>>, vector<1x384xf32>
    %c0_3 = arith.constant 0 : index
    %c0_4 = arith.constant 0 : index
    %2 = vector.load %arg7[%c0_3, %c0_4] : memref<1x384xf32, #tpu.memory_space<vmem>>, vector<1x384xf32>
    %cst = arith.constant 0.000000e+00 : f32
    %3 = vector.broadcast %cst : f32 to vector<8x128xf32>
    %c0_5 = arith.constant 0 : index
    %c0_6 = arith.constant 0 : index
    %4 = vector.load %arg12[%c0_5, %c0_6] : memref<8x128xf32, #tpu.memory_space<vmem>>, vector<8x128xf32>
    tpu.vector_store %arg12[%c0_5, %c0_6], %3 {strides = array<i32>} : memref<8x128xf32, #tpu.memory_space<vmem>>, vector<8x128xf32>,
    %5 = arith.index_cast %arg0 : i32 to index
    %6 = memref.load %arg1[%5] : memref<1xi32, #tpu.memory_space<smem>>
    %c7_i32 = arith.constant 7 : i32
    %7 = arith.addi %6, %c7_i32 : i32
    %c8_i32 = arith.constant 8 : i32
    %8 = arith.divsi %7, %c8_i32 : i32
    %c0_i32 = arith.constant 0 : i32
    %9 = arith.subi %8, %c0_i32 : i32
    %c1_i32 = arith.constant 1 : i32
    %c1_i32_7 = arith.constant 1 : i32
    %10 = arith.subi %c1_i32, %c1_i32_7 : i32
    %11 = arith.addi %9, %10 : i32
    %c1_i32_8 = arith.constant 1 : i32
    %12 = arith.divsi %11, %c1_i32_8 : i32
    %c1_i32_9 = arith.constant 1 : i32
    %c0_i32_10 = arith.constant 0 : i32
    %c0_i32_11 = arith.constant 0 : i32
    %13 = arith.subi %12, %c0_i32_11 : i32
    %14 = arith.addi %c0_i32_11, %13 : i32
    %c1_i32_12 = arith.constant 1 : i32
    scf.for %arg13 = %c0_i32_11 to %14 step %c1_i32_12  : i32 {
      %23 = arith.muli %arg13, %c1_i32_9 : i32
      %24 = arith.addi %c0_i32_10, %23 : i32
      %c8_i32_22 = arith.constant 8 : i32
      %25 = arith.muli %24, %c8_i32_22 : i32
      %26 = tpu.assume_multiple %25, 8 : i32
      %27 = arith.index_cast %26 : i32 to index
      %c0_23 = arith.constant 0 : index
      %c0_24 = arith.constant 0 : index
      %28 = vector.load %arg2[%27, %c0_23, %c0_24] : memref<8x8x32xbf16, #tpu.memory_space<vmem>>, vector<8x8x32xbf16>
      %29 = vector.shape_cast %28 : vector<8x8x32xbf16> to vector<64x32xbf16>
      %c0_25 = arith.constant 0 : index
      %c0_26 = arith.constant 0 : index
      %30 = vector.load %arg4[%c0_25, %c0_26] : memref<32x384xbf16, #tpu.memory_space<vmem>>, vector<32x384xbf16>
      %cst_27 = arith.constant dense<0.000000e+00> : vector<64x384xf32>
      %31 = tpu.matmul %29, %30, %cst_27 {dimension_numbers = #tpu.dot_dimension_numbers<[1], [0], [0], [1], [0, 0, 1, 1], [], []>} : vector<64x32xbf16>, vector<32x384xbf16>, vector<64x384xf32> -> vector<64x384xf32>
      %32 = vector.broadcast %1 : vector<1x384xf32> to vector<64x384xf32>
      %33 = arith.addf %31, %32 : vector<64x384xf32>
      %34 = vector.shape_cast %33 : vector<64x384xf32> to vector<8x8x384xf32>
      %c0_28 = arith.constant 0 : index
      %c0_29 = arith.constant 0 : index
      %c0_30 = arith.constant 0 : index
      %35 = vector.load %arg11[%c0_28, %c0_29, %c0_30] : memref<8x8x384xf32, #tpu.memory_space<vmem>>, vector<8x8x384xf32>
      tpu.vector_store %arg11[%c0_28, %c0_29, %c0_30], %34 {strides = array<i32>} : memref<8x8x384xf32, #tpu.memory_space<vmem>>, vector<8x8x384xf32>,
      %c0_31 = arith.constant 0 : index
      %c0_32 = arith.constant 0 : index
      %36 = vector.load %arg12[%c0_31, %c0_32] : memref<8x128xf32, #tpu.memory_space<vmem>>, vector<8x128xf32>
      %c0_i32_33 = arith.constant 0 : i32
      %37 = arith.addi %26, %c0_i32_33 : i32
      %38 = arith.index_cast %c0_i32_33 : i32 to index
      %c0_34 = arith.constant 0 : index
      %c0_35 = arith.constant 0 : index
      %39 = vector.load %arg11[%38, %c0_34, %c0_35] : memref<8x8x384xf32, #tpu.memory_space<vmem>>, vector<1x8x384xf32>
      %40 = vector.shape_cast %39 : vector<1x8x384xf32> to vector<8x384xf32>
      %41 = arith.truncf %36 : vector<8x128xf32> to vector<8x128xbf16>
      %c0_36 = arith.constant 0 : index
      %c0_37 = arith.constant 0 : index
      %42 = vector.load %arg5[%c0_36, %c0_37] : memref<128x384xbf16, #tpu.memory_space<vmem>>, vector<128x384xbf16>
      %cst_38 = arith.constant dense<0.000000e+00> : vector<8x384xf32>
      %43 = tpu.matmul %41, %42, %cst_38 {dimension_numbers = #tpu.dot_dimension_numbers<[1], [0], [0], [1], [0, 0, 1, 1], [], []>} : vector<8x128xbf16>, vector<128x384xbf16>, vector<8x384xf32> -> vector<8x384xf32>
      %44 = vector.broadcast %2 : vector<1x384xf32> to vector<8x384xf32>
      %45 = arith.addf %43, %44 : vector<8x384xf32>
      %46 = vector.extract_strided_slice %40 {offsets = [0, 0], sizes = [8, 128], strides = [1, 1]} : vector<8x384xf32> to vector<8x128xf32>
      %47 = vector.extract_strided_slice %45 {offsets = [0, 0], sizes = [8, 128], strides = [1, 1]} : vector<8x384xf32> to vector<8x128xf32>
      %48 = arith.addf %46, %47 : vector<8x128xf32>
      %49 = arith.negf %48 : vector<8x128xf32>
      %50 = math.exp %49 : vector<8x128xf32>
      %cst_39 = arith.constant 1.000000e+00 : f32
      %51 = vector.broadcast %cst_39 : f32 to vector<8x128xf32>
      %52 = arith.addf %51, %50 : vector<8x128xf32>
      %53 = arith.divf %51, %52 : vector<8x128xf32>
      %54 = vector.extract_strided_slice %40 {offsets = [0, 128], sizes = [8, 128], strides = [1, 1]} : vector<8x384xf32> to vector<8x128xf32>
      %55 = vector.extract_strided_slice %45 {offsets = [0, 128], sizes = [8, 128], strides = [1, 1]} : vector<8x384xf32> to vector<8x128xf32>
      %56 = arith.addf %54, %55 : vector<8x128xf32>
      %57 = arith.negf %56 : vector<8x128xf32>
      %58 = math.exp %57 : vector<8x128xf32>
      %cst_40 = arith.constant 1.000000e+00 : f32
      %59 = vector.broadcast %cst_40 : f32 to vector<8x128xf32>
      %60 = arith.addf %59, %58 : vector<8x128xf32>
      %61 = arith.divf %59, %60 : vector<8x128xf32>
      %62 = vector.extract_strided_slice %40 {offsets = [0, 256], sizes = [8, 128], strides = [1, 1]} : vector<8x384xf32> to vector<8x128xf32>
      %63 = vector.extract_strided_slice %45 {offsets = [0, 256], sizes = [8, 128], strides = [1, 1]} : vector<8x384xf32> to vector<8x128xf32>
      %64 = arith.mulf %53, %63 : vector<8x128xf32>
      %65 = arith.addf %62, %64 : vector<8x128xf32>
      %66 = math.tanh %65 : vector<8x128xf32>
      %cst_41 = arith.constant 1.000000e+00 : f32
      %67 = vector.broadcast %cst_41 : f32 to vector<8x128xf32>
      %68 = arith.subf %67, %61 : vector<8x128xf32>
      %69 = arith.mulf %68, %66 : vector<8x128xf32>
      %70 = arith.mulf %61, %36 : vector<8x128xf32>
      %71 = arith.addf %69, %70 : vector<8x128xf32>
      %72 = vector.broadcast %37 : i32 to vector<8x1xi32>
      %73 = arith.cmpi slt, %72, %0 : vector<8x1xi32>
      %74 = vector.shape_cast %73 : vector<8x1xi1> to vector<8x1xi1>
      %75 = vector.broadcast %74 : vector<8x1xi1> to vector<8x128xi1>
      %76 = arith.select %75, %71, %36 : vector<8x128xi1>, vector<8x128xf32>
      %c1_i32_42 = arith.constant 1 : i32
      %77 = arith.addi %26, %c1_i32_42 : i32
      %78 = arith.index_cast %c1_i32_42 : i32 to index
      %c0_43 = arith.constant 0 : index
      %c0_44 = arith.constant 0 : index
      %79 = vector.load %arg11[%78, %c0_43, %c0_44] : memref<8x8x384xf32, #tpu.memory_space<vmem>>, vector<1x8x384xf32>
      %80 = vector.shape_cast %79 : vector<1x8x384xf32> to vector<8x384xf32>
      %81 = arith.truncf %76 : vector<8x128xf32> to vector<8x128xbf16>
      %c0_45 = arith.constant 0 : index
      %c0_46 = arith.constant 0 : index
      %82 = vector.load %arg5[%c0_45, %c0_46] : memref<128x384xbf16, #tpu.memory_space<vmem>>, vector<128x384xbf16>
      %cst_47 = arith.constant dense<0.000000e+00> : vector<8x384xf32>
      %83 = tpu.matmul %81, %82, %cst_47 {dimension_numbers = #tpu.dot_dimension_numbers<[1], [0], [0], [1], [0, 0, 1, 1], [], []>} : vector<8x128xbf16>, vector<128x384xbf16>, vector<8x384xf32> -> vector<8x384xf32>
      %84 = vector.broadcast %2 : vector<1x384xf32> to vector<8x384xf32>
      %85 = arith.addf %83, %84 : vector<8x384xf32>
      %86 = vector.extract_strided_slice %80 {offsets = [0, 0], sizes = [8, 128], strides = [1, 1]} : vector<8x384xf32> to vector<8x128xf32>
      %87 = vector.extract_strided_slice %85 {offsets = [0, 0], sizes = [8, 128], strides = [1, 1]} : vector<8x384xf32> to vector<8x128xf32>
      %88 = arith.addf %86, %87 : vector<8x128xf32>
      %89 = arith.negf %88 : vector<8x128xf32>
      %90 = math.exp %89 : vector<8x128xf32>
      %cst_48 = arith.constant 1.000000e+00 : f32
      %91 = vector.broadcast %cst_48 : f32 to vector<8x128xf32>
      %92 = arith.addf %91, %90 : vector<8x128xf32>
      %93 = arith.divf %91, %92 : vector<8x128xf32>
      %94 = vector.extract_strided_slice %80 {offsets = [0, 128], sizes = [8, 128], strides = [1, 1]} : vector<8x384xf32> to vector<8x128xf32>
      %95 = vector.extract_strided_slice %85 {offsets = [0, 128], sizes = [8, 128], strides = [1, 1]} : vector<8x384xf32> to vector<8x128xf32>
      %96 = arith.addf %94, %95 : vector<8x128xf32>
      %97 = arith.negf %96 : vector<8x128xf32>
      %98 = math.exp %97 : vector<8x128xf32>
      %cst_49 = arith.constant 1.000000e+00 : f32
      %99 = vector.broadcast %cst_49 : f32 to vector<8x128xf32>
      %100 = arith.addf %99, %98 : vector<8x128xf32>
      %101 = arith.divf %99, %100 : vector<8x128xf32>
      %102 = vector.extract_strided_slice %80 {offsets = [0, 256], sizes = [8, 128], strides = [1, 1]} : vector<8x384xf32> to vector<8x128xf32>
      %103 = vector.extract_strided_slice %85 {offsets = [0, 256], sizes = [8, 128], strides = [1, 1]} : vector<8x384xf32> to vector<8x128xf32>
      %104 = arith.mulf %93, %103 : vector<8x128xf32>
      %105 = arith.addf %102, %104 : vector<8x128xf32>
      %106 = math.tanh %105 : vector<8x128xf32>
      %cst_50 = arith.constant 1.000000e+00 : f32
      %107 = vector.broadcast %cst_50 : f32 to vector<8x128xf32>
      %108 = arith.subf %107, %101 : vector<8x128xf32>
      %109 = arith.mulf %108, %106 : vector<8x128xf32>
      %110 = arith.mulf %101, %76 : vector<8x128xf32>
      %111 = arith.addf %109, %110 : vector<8x128xf32>
      %112 = vector.broadcast %77 : i32 to vector<8x1xi32>
      %113 = arith.cmpi slt, %112, %0 : vector<8x1xi32>
      %114 = vector.shape_cast %113 : vector<8x1xi1> to vector<8x1xi1>
      %115 = vector.broadcast %114 : vector<8x1xi1> to vector<8x128xi1>
      %116 = arith.select %115, %111, %76 : vector<8x128xi1>, vector<8x128xf32>
      %c2_i32 = arith.constant 2 : i32
      %117 = arith.addi %26, %c2_i32 : i32
      %118 = arith.index_cast %c2_i32 : i32 to index
      %c0_51 = arith.constant 0 : index
      %c0_52 = arith.constant 0 : index
      %119 = vector.load %arg11[%118, %c0_51, %c0_52] : memref<8x8x384xf32, #tpu.memory_space<vmem>>, vector<1x8x384xf32>
      %120 = vector.shape_cast %119 : vector<1x8x384xf32> to vector<8x384xf32>
      %121 = arith.truncf %116 : vector<8x128xf32> to vector<8x128xbf16>
      %c0_53 = arith.constant 0 : index
      %c0_54 = arith.constant 0 : index
      %122 = vector.load %arg5[%c0_53, %c0_54] : memref<128x384xbf16, #tpu.memory_space<vmem>>, vector<128x384xbf16>
      %cst_55 = arith.constant dense<0.000000e+00> : vector<8x384xf32>
      %123 = tpu.matmul %121, %122, %cst_55 {dimension_numbers = #tpu.dot_dimension_numbers<[1], [0], [0], [1], [0, 0, 1, 1], [], []>} : vector<8x128xbf16>, vector<128x384xbf16>, vector<8x384xf32> -> vector<8x384xf32>
      %124 = vector.broadcast %2 : vector<1x384xf32> to vector<8x384xf32>
      %125 = arith.addf %123, %124 : vector<8x384xf32>
      %126 = vector.extract_strided_slice %120 {offsets = [0, 0], sizes = [8, 128], strides = [1, 1]} : vector<8x384xf32> to vector<8x128xf32>
      %127 = vector.extract_strided_slice %125 {offsets = [0, 0], sizes = [8, 128], strides = [1, 1]} : vector<8x384xf32> to vector<8x128xf32>
      %128 = arith.addf %126, %127 : vector<8x128xf32>
      %129 = arith.negf %128 : vector<8x128xf32>
      %130 = math.exp %129 : vector<8x128xf32>
      %cst_56 = arith.constant 1.000000e+00 : f32
      %131 = vector.broadcast %cst_56 : f32 to vector<8x128xf32>
      %132 = arith.addf %131, %130 : vector<8x128xf32>
      %133 = arith.divf %131, %132 : vector<8x128xf32>
      %134 = vector.extract_strided_slice %120 {offsets = [0, 128], sizes = [8, 128], strides = [1, 1]} : vector<8x384xf32> to vector<8x128xf32>
      %135 = vector.extract_strided_slice %125 {offsets = [0, 128], sizes = [8, 128], strides = [1, 1]} : vector<8x384xf32> to vector<8x128xf32>
      %136 = arith.addf %134, %135 : vector<8x128xf32>
      %137 = arith.negf %136 : vector<8x128xf32>
      %138 = math.exp %137 : vector<8x128xf32>
      %cst_57 = arith.constant 1.000000e+00 : f32
      %139 = vector.broadcast %cst_57 : f32 to vector<8x128xf32>
      %140 = arith.addf %139, %138 : vector<8x128xf32>
      %141 = arith.divf %139, %140 : vector<8x128xf32>
      %142 = vector.extract_strided_slice %120 {offsets = [0, 256], sizes = [8, 128], strides = [1, 1]} : vector<8x384xf32> to vector<8x128xf32>
      %143 = vector.extract_strided_slice %125 {offsets = [0, 256], sizes = [8, 128], strides = [1, 1]} : vector<8x384xf32> to vector<8x128xf32>
      %144 = arith.mulf %133, %143 : vector<8x128xf32>
      %145 = arith.addf %142, %144 : vector<8x128xf32>
      %146 = math.tanh %145 : vector<8x128xf32>
      %cst_58 = arith.constant 1.000000e+00 : f32
      %147 = vector.broadcast %cst_58 : f32 to vector<8x128xf32>
      %148 = arith.subf %147, %141 : vector<8x128xf32>
      %149 = arith.mulf %148, %146 : vector<8x128xf32>
      %150 = arith.mulf %141, %116 : vector<8x128xf32>
      %151 = arith.addf %149, %150 : vector<8x128xf32>
      %152 = vector.broadcast %117 : i32 to vector<8x1xi32>
      %153 = arith.cmpi slt, %152, %0 : vector<8x1xi32>
      %154 = vector.shape_cast %153 : vector<8x1xi1> to vector<8x1xi1>
      %155 = vector.broadcast %154 : vector<8x1xi1> to vector<8x128xi1>
      %156 = arith.select %155, %151, %116 : vector<8x128xi1>, vector<8x128xf32>
      %c3_i32 = arith.constant 3 : i32
      %157 = arith.addi %26, %c3_i32 : i32
      %158 = arith.index_cast %c3_i32 : i32 to index
      %c0_59 = arith.constant 0 : index
      %c0_60 = arith.constant 0 : index
      %159 = vector.load %arg11[%158, %c0_59, %c0_60] : memref<8x8x384xf32, #tpu.memory_space<vmem>>, vector<1x8x384xf32>
      %160 = vector.shape_cast %159 : vector<1x8x384xf32> to vector<8x384xf32>
      %161 = arith.truncf %156 : vector<8x128xf32> to vector<8x128xbf16>
      %c0_61 = arith.constant 0 : index
      %c0_62 = arith.constant 0 : index
      %162 = vector.load %arg5[%c0_61, %c0_62] : memref<128x384xbf16, #tpu.memory_space<vmem>>, vector<128x384xbf16>
      %cst_63 = arith.constant dense<0.000000e+00> : vector<8x384xf32>
      %163 = tpu.matmul %161, %162, %cst_63 {dimension_numbers = #tpu.dot_dimension_numbers<[1], [0], [0], [1], [0, 0, 1, 1], [], []>} : vector<8x128xbf16>, vector<128x384xbf16>, vector<8x384xf32> -> vector<8x384xf32>
      %164 = vector.broadcast %2 : vector<1x384xf32> to vector<8x384xf32>
      %165 = arith.addf %163, %164 : vector<8x384xf32>
      %166 = vector.extract_strided_slice %160 {offsets = [0, 0], sizes = [8, 128], strides = [1, 1]} : vector<8x384xf32> to vector<8x128xf32>
      %167 = vector.extract_strided_slice %165 {offsets = [0, 0], sizes = [8, 128], strides = [1, 1]} : vector<8x384xf32> to vector<8x128xf32>
      %168 = arith.addf %166, %167 : vector<8x128xf32>
      %169 = arith.negf %168 : vector<8x128xf32>
      %170 = math.exp %169 : vector<8x128xf32>
      %cst_64 = arith.constant 1.000000e+00 : f32
      %171 = vector.broadcast %cst_64 : f32 to vector<8x128xf32>
      %172 = arith.addf %171, %170 : vector<8x128xf32>
      %173 = arith.divf %171, %172 : vector<8x128xf32>
      %174 = vector.extract_strided_slice %160 {offsets = [0, 128], sizes = [8, 128], strides = [1, 1]} : vector<8x384xf32> to vector<8x128xf32>
      %175 = vector.extract_strided_slice %165 {offsets = [0, 128], sizes = [8, 128], strides = [1, 1]} : vector<8x384xf32> to vector<8x128xf32>
      %176 = arith.addf %174, %175 : vector<8x128xf32>
      %177 = arith.negf %176 : vector<8x128xf32>
      %178 = math.exp %177 : vector<8x128xf32>
      %cst_65 = arith.constant 1.000000e+00 : f32
      %179 = vector.broadcast %cst_65 : f32 to vector<8x128xf32>
      %180 = arith.addf %179, %178 : vector<8x128xf32>
      %181 = arith.divf %179, %180 : vector<8x128xf32>
      %182 = vector.extract_strided_slice %160 {offsets = [0, 256], sizes = [8, 128], strides = [1, 1]} : vector<8x384xf32> to vector<8x128xf32>
      %183 = vector.extract_strided_slice %165 {offsets = [0, 256], sizes = [8, 128], strides = [1, 1]} : vector<8x384xf32> to vector<8x128xf32>
      %184 = arith.mulf %173, %183 : vector<8x128xf32>
      %185 = arith.addf %182, %184 : vector<8x128xf32>
      %186 = math.tanh %185 : vector<8x128xf32>
      %cst_66 = arith.constant 1.000000e+00 : f32
      %187 = vector.broadcast %cst_66 : f32 to vector<8x128xf32>
      %188 = arith.subf %187, %181 : vector<8x128xf32>
      %189 = arith.mulf %188, %186 : vector<8x128xf32>
      %190 = arith.mulf %181, %156 : vector<8x128xf32>
      %191 = arith.addf %189, %190 : vector<8x128xf32>
      %192 = vector.broadcast %157 : i32 to vector<8x1xi32>
      %193 = arith.cmpi slt, %192, %0 : vector<8x1xi32>
      %194 = vector.shape_cast %193 : vector<8x1xi1> to vector<8x1xi1>
      %195 = vector.broadcast %194 : vector<8x1xi1> to vector<8x128xi1>
      %196 = arith.select %195, %191, %156 : vector<8x128xi1>, vector<8x128xf32>
      %c4_i32 = arith.constant 4 : i32
      %197 = arith.addi %26, %c4_i32 : i32
      %198 = arith.index_cast %c4_i32 : i32 to index
      %c0_67 = arith.constant 0 : index
      %c0_68 = arith.constant 0 : index
      %199 = vector.load %arg11[%198, %c0_67, %c0_68] : memref<8x8x384xf32, #tpu.memory_space<vmem>>, vector<1x8x384xf32>
      %200 = vector.shape_cast %199 : vector<1x8x384xf32> to vector<8x384xf32>
      %201 = arith.truncf %196 : vector<8x128xf32> to vector<8x128xbf16>
      %c0_69 = arith.constant 0 : index
      %c0_70 = arith.constant 0 : index
      %202 = vector.load %arg5[%c0_69, %c0_70] : memref<128x384xbf16, #tpu.memory_space<vmem>>, vector<128x384xbf16>
      %cst_71 = arith.constant dense<0.000000e+00> : vector<8x384xf32>
      %203 = tpu.matmul %201, %202, %cst_71 {dimension_numbers = #tpu.dot_dimension_numbers<[1], [0], [0], [1], [0, 0, 1, 1], [], []>} : vector<8x128xbf16>, vector<128x384xbf16>, vector<8x384xf32> -> vector<8x384xf32>
      %204 = vector.broadcast %2 : vector<1x384xf32> to vector<8x384xf32>
      %205 = arith.addf %203, %204 : vector<8x384xf32>
      %206 = vector.extract_strided_slice %200 {offsets = [0, 0], sizes = [8, 128], strides = [1, 1]} : vector<8x384xf32> to vector<8x128xf32>
      %207 = vector.extract_strided_slice %205 {offsets = [0, 0], sizes = [8, 128], strides = [1, 1]} : vector<8x384xf32> to vector<8x128xf32>
      %208 = arith.addf %206, %207 : vector<8x128xf32>
      %209 = arith.negf %208 : vector<8x128xf32>
      %210 = math.exp %209 : vector<8x128xf32>
      %cst_72 = arith.constant 1.000000e+00 : f32
      %211 = vector.broadcast %cst_72 : f32 to vector<8x128xf32>
      %212 = arith.addf %211, %210 : vector<8x128xf32>
      %213 = arith.divf %211, %212 : vector<8x128xf32>
      %214 = vector.extract_strided_slice %200 {offsets = [0, 128], sizes = [8, 128], strides = [1, 1]} : vector<8x384xf32> to vector<8x128xf32>
      %215 = vector.extract_strided_slice %205 {offsets = [0, 128], sizes = [8, 128], strides = [1, 1]} : vector<8x384xf32> to vector<8x128xf32>
      %216 = arith.addf %214, %215 : vector<8x128xf32>
      %217 = arith.negf %216 : vector<8x128xf32>
      %218 = math.exp %217 : vector<8x128xf32>
      %cst_73 = arith.constant 1.000000e+00 : f32
      %219 = vector.broadcast %cst_73 : f32 to vector<8x128xf32>
      %220 = arith.addf %219, %218 : vector<8x128xf32>
      %221 = arith.divf %219, %220 : vector<8x128xf32>
      %222 = vector.extract_strided_slice %200 {offsets = [0, 256], sizes = [8, 128], strides = [1, 1]} : vector<8x384xf32> to vector<8x128xf32>
      %223 = vector.extract_strided_slice %205 {offsets = [0, 256], sizes = [8, 128], strides = [1, 1]} : vector<8x384xf32> to vector<8x128xf32>
      %224 = arith.mulf %213, %223 : vector<8x128xf32>
      %225 = arith.addf %222, %224 : vector<8x128xf32>
      %226 = math.tanh %225 : vector<8x128xf32>
      %cst_74 = arith.constant 1.000000e+00 : f32
      %227 = vector.broadcast %cst_74 : f32 to vector<8x128xf32>
      %228 = arith.subf %227, %221 : vector<8x128xf32>
      %229 = arith.mulf %228, %226 : vector<8x128xf32>
      %230 = arith.mulf %221, %196 : vector<8x128xf32>
      %231 = arith.addf %229, %230 : vector<8x128xf32>
      %232 = vector.broadcast %197 : i32 to vector<8x1xi32>
      %233 = arith.cmpi slt, %232, %0 : vector<8x1xi32>
      %234 = vector.shape_cast %233 : vector<8x1xi1> to vector<8x1xi1>
      %235 = vector.broadcast %234 : vector<8x1xi1> to vector<8x128xi1>
      %236 = arith.select %235, %231, %196 : vector<8x128xi1>, vector<8x128xf32>
      %c5_i32 = arith.constant 5 : i32
      %237 = arith.addi %26, %c5_i32 : i32
      %238 = arith.index_cast %c5_i32 : i32 to index
      %c0_75 = arith.constant 0 : index
      %c0_76 = arith.constant 0 : index
      %239 = vector.load %arg11[%238, %c0_75, %c0_76] : memref<8x8x384xf32, #tpu.memory_space<vmem>>, vector<1x8x384xf32>
      %240 = vector.shape_cast %239 : vector<1x8x384xf32> to vector<8x384xf32>
      %241 = arith.truncf %236 : vector<8x128xf32> to vector<8x128xbf16>
      %c0_77 = arith.constant 0 : index
      %c0_78 = arith.constant 0 : index
      %242 = vector.load %arg5[%c0_77, %c0_78] : memref<128x384xbf16, #tpu.memory_space<vmem>>, vector<128x384xbf16>
      %cst_79 = arith.constant dense<0.000000e+00> : vector<8x384xf32>
      %243 = tpu.matmul %241, %242, %cst_79 {dimension_numbers = #tpu.dot_dimension_numbers<[1], [0], [0], [1], [0, 0, 1, 1], [], []>} : vector<8x128xbf16>, vector<128x384xbf16>, vector<8x384xf32> -> vector<8x384xf32>
      %244 = vector.broadcast %2 : vector<1x384xf32> to vector<8x384xf32>
      %245 = arith.addf %243, %244 : vector<8x384xf32>
      %246 = vector.extract_strided_slice %240 {offsets = [0, 0], sizes = [8, 128], strides = [1, 1]} : vector<8x384xf32> to vector<8x128xf32>
      %247 = vector.extract_strided_slice %245 {offsets = [0, 0], sizes = [8, 128], strides = [1, 1]} : vector<8x384xf32> to vector<8x128xf32>
      %248 = arith.addf %246, %247 : vector<8x128xf32>
      %249 = arith.negf %248 : vector<8x128xf32>
      %250 = math.exp %249 : vector<8x128xf32>
      %cst_80 = arith.constant 1.000000e+00 : f32
      %251 = vector.broadcast %cst_80 : f32 to vector<8x128xf32>
      %252 = arith.addf %251, %250 : vector<8x128xf32>
      %253 = arith.divf %251, %252 : vector<8x128xf32>
      %254 = vector.extract_strided_slice %240 {offsets = [0, 128], sizes = [8, 128], strides = [1, 1]} : vector<8x384xf32> to vector<8x128xf32>
      %255 = vector.extract_strided_slice %245 {offsets = [0, 128], sizes = [8, 128], strides = [1, 1]} : vector<8x384xf32> to vector<8x128xf32>
      %256 = arith.addf %254, %255 : vector<8x128xf32>
      %257 = arith.negf %256 : vector<8x128xf32>
      %258 = math.exp %257 : vector<8x128xf32>
      %cst_81 = arith.constant 1.000000e+00 : f32
      %259 = vector.broadcast %cst_81 : f32 to vector<8x128xf32>
      %260 = arith.addf %259, %258 : vector<8x128xf32>
      %261 = arith.divf %259, %260 : vector<8x128xf32>
      %262 = vector.extract_strided_slice %240 {offsets = [0, 256], sizes = [8, 128], strides = [1, 1]} : vector<8x384xf32> to vector<8x128xf32>
      %263 = vector.extract_strided_slice %245 {offsets = [0, 256], sizes = [8, 128], strides = [1, 1]} : vector<8x384xf32> to vector<8x128xf32>
      %264 = arith.mulf %253, %263 : vector<8x128xf32>
      %265 = arith.addf %262, %264 : vector<8x128xf32>
      %266 = math.tanh %265 : vector<8x128xf32>
      %cst_82 = arith.constant 1.000000e+00 : f32
      %267 = vector.broadcast %cst_82 : f32 to vector<8x128xf32>
      %268 = arith.subf %267, %261 : vector<8x128xf32>
      %269 = arith.mulf %268, %266 : vector<8x128xf32>
      %270 = arith.mulf %261, %236 : vector<8x128xf32>
      %271 = arith.addf %269, %270 : vector<8x128xf32>
      %272 = vector.broadcast %237 : i32 to vector<8x1xi32>
      %273 = arith.cmpi slt, %272, %0 : vector<8x1xi32>
      %274 = vector.shape_cast %273 : vector<8x1xi1> to vector<8x1xi1>
      %275 = vector.broadcast %274 : vector<8x1xi1> to vector<8x128xi1>
      %276 = arith.select %275, %271, %236 : vector<8x128xi1>, vector<8x128xf32>
      %c6_i32 = arith.constant 6 : i32
      %277 = arith.addi %26, %c6_i32 : i32
      %278 = arith.index_cast %c6_i32 : i32 to index
      %c0_83 = arith.constant 0 : index
      %c0_84 = arith.constant 0 : index
      %279 = vector.load %arg11[%278, %c0_83, %c0_84] : memref<8x8x384xf32, #tpu.memory_space<vmem>>, vector<1x8x384xf32>
      %280 = vector.shape_cast %279 : vector<1x8x384xf32> to vector<8x384xf32>
      %281 = arith.truncf %276 : vector<8x128xf32> to vector<8x128xbf16>
      %c0_85 = arith.constant 0 : index
      %c0_86 = arith.constant 0 : index
      %282 = vector.load %arg5[%c0_85, %c0_86] : memref<128x384xbf16, #tpu.memory_space<vmem>>, vector<128x384xbf16>
      %cst_87 = arith.constant dense<0.000000e+00> : vector<8x384xf32>
      %283 = tpu.matmul %281, %282, %cst_87 {dimension_numbers = #tpu.dot_dimension_numbers<[1], [0], [0], [1], [0, 0, 1, 1], [], []>} : vector<8x128xbf16>, vector<128x384xbf16>, vector<8x384xf32> -> vector<8x384xf32>
      %284 = vector.broadcast %2 : vector<1x384xf32> to vector<8x384xf32>
      %285 = arith.addf %283, %284 : vector<8x384xf32>
      %286 = vector.extract_strided_slice %280 {offsets = [0, 0], sizes = [8, 128], strides = [1, 1]} : vector<8x384xf32> to vector<8x128xf32>
      %287 = vector.extract_strided_slice %285 {offsets = [0, 0], sizes = [8, 128], strides = [1, 1]} : vector<8x384xf32> to vector<8x128xf32>
      %288 = arith.addf %286, %287 : vector<8x128xf32>
      %289 = arith.negf %288 : vector<8x128xf32>
      %290 = math.exp %289 : vector<8x128xf32>
      %cst_88 = arith.constant 1.000000e+00 : f32
      %291 = vector.broadcast %cst_88 : f32 to vector<8x128xf32>
      %292 = arith.addf %291, %290 : vector<8x128xf32>
      %293 = arith.divf %291, %292 : vector<8x128xf32>
      %294 = vector.extract_strided_slice %280 {offsets = [0, 128], sizes = [8, 128], strides = [1, 1]} : vector<8x384xf32> to vector<8x128xf32>
      %295 = vector.extract_strided_slice %285 {offsets = [0, 128], sizes = [8, 128], strides = [1, 1]} : vector<8x384xf32> to vector<8x128xf32>
      %296 = arith.addf %294, %295 : vector<8x128xf32>
      %297 = arith.negf %296 : vector<8x128xf32>
      %298 = math.exp %297 : vector<8x128xf32>
      %cst_89 = arith.constant 1.000000e+00 : f32
      %299 = vector.broadcast %cst_89 : f32 to vector<8x128xf32>
      %300 = arith.addf %299, %298 : vector<8x128xf32>
      %301 = arith.divf %299, %300 : vector<8x128xf32>
      %302 = vector.extract_strided_slice %280 {offsets = [0, 256], sizes = [8, 128], strides = [1, 1]} : vector<8x384xf32> to vector<8x128xf32>
      %303 = vector.extract_strided_slice %285 {offsets = [0, 256], sizes = [8, 128], strides = [1, 1]} : vector<8x384xf32> to vector<8x128xf32>
      %304 = arith.mulf %293, %303 : vector<8x128xf32>
      %305 = arith.addf %302, %304 : vector<8x128xf32>
      %306 = math.tanh %305 : vector<8x128xf32>
      %cst_90 = arith.constant 1.000000e+00 : f32
      %307 = vector.broadcast %cst_90 : f32 to vector<8x128xf32>
      %308 = arith.subf %307, %301 : vector<8x128xf32>
      %309 = arith.mulf %308, %306 : vector<8x128xf32>
      %310 = arith.mulf %301, %276 : vector<8x128xf32>
      %311 = arith.addf %309, %310 : vector<8x128xf32>
      %312 = vector.broadcast %277 : i32 to vector<8x1xi32>
      %313 = arith.cmpi slt, %312, %0 : vector<8x1xi32>
      %314 = vector.shape_cast %313 : vector<8x1xi1> to vector<8x1xi1>
      %315 = vector.broadcast %314 : vector<8x1xi1> to vector<8x128xi1>
      %316 = arith.select %315, %311, %276 : vector<8x128xi1>, vector<8x128xf32>
      %c7_i32_91 = arith.constant 7 : i32
      %317 = arith.addi %26, %c7_i32_91 : i32
      %318 = arith.index_cast %c7_i32_91 : i32 to index
      %c0_92 = arith.constant 0 : index
      %c0_93 = arith.constant 0 : index
      %319 = vector.load %arg11[%318, %c0_92, %c0_93] : memref<8x8x384xf32, #tpu.memory_space<vmem>>, vector<1x8x384xf32>
      %320 = vector.shape_cast %319 : vector<1x8x384xf32> to vector<8x384xf32>
      %321 = arith.truncf %316 : vector<8x128xf32> to vector<8x128xbf16>
      %c0_94 = arith.constant 0 : index
      %c0_95 = arith.constant 0 : index
      %322 = vector.load %arg5[%c0_94, %c0_95] : memref<128x384xbf16, #tpu.memory_space<vmem>>, vector<128x384xbf16>
      %cst_96 = arith.constant dense<0.000000e+00> : vector<8x384xf32>
      %323 = tpu.matmul %321, %322, %cst_96 {dimension_numbers = #tpu.dot_dimension_numbers<[1], [0], [0], [1], [0, 0, 1, 1], [], []>} : vector<8x128xbf16>, vector<128x384xbf16>, vector<8x384xf32> -> vector<8x384xf32>
      %324 = vector.broadcast %2 : vector<1x384xf32> to vector<8x384xf32>
      %325 = arith.addf %323, %324 : vector<8x384xf32>
      %326 = vector.extract_strided_slice %320 {offsets = [0, 0], sizes = [8, 128], strides = [1, 1]} : vector<8x384xf32> to vector<8x128xf32>
      %327 = vector.extract_strided_slice %325 {offsets = [0, 0], sizes = [8, 128], strides = [1, 1]} : vector<8x384xf32> to vector<8x128xf32>
      %328 = arith.addf %326, %327 : vector<8x128xf32>
      %329 = arith.negf %328 : vector<8x128xf32>
      %330 = math.exp %329 : vector<8x128xf32>
      %cst_97 = arith.constant 1.000000e+00 : f32
      %331 = vector.broadcast %cst_97 : f32 to vector<8x128xf32>
      %332 = arith.addf %331, %330 : vector<8x128xf32>
      %333 = arith.divf %331, %332 : vector<8x128xf32>
      %334 = vector.extract_strided_slice %320 {offsets = [0, 128], sizes = [8, 128], strides = [1, 1]} : vector<8x384xf32> to vector<8x128xf32>
      %335 = vector.extract_strided_slice %325 {offsets = [0, 128], sizes = [8, 128], strides = [1, 1]} : vector<8x384xf32> to vector<8x128xf32>
      %336 = arith.addf %334, %335 : vector<8x128xf32>
      %337 = arith.negf %336 : vector<8x128xf32>
      %338 = math.exp %337 : vector<8x128xf32>
      %cst_98 = arith.constant 1.000000e+00 : f32
      %339 = vector.broadcast %cst_98 : f32 to vector<8x128xf32>
      %340 = arith.addf %339, %338 : vector<8x128xf32>
      %341 = arith.divf %339, %340 : vector<8x128xf32>
      %342 = vector.extract_strided_slice %320 {offsets = [0, 256], sizes = [8, 128], strides = [1, 1]} : vector<8x384xf32> to vector<8x128xf32>
      %343 = vector.extract_strided_slice %325 {offsets = [0, 256], sizes = [8, 128], strides = [1, 1]} : vector<8x384xf32> to vector<8x128xf32>
      %344 = arith.mulf %333, %343 : vector<8x128xf32>
      %345 = arith.addf %342, %344 : vector<8x128xf32>
      %346 = math.tanh %345 : vector<8x128xf32>
      %cst_99 = arith.constant 1.000000e+00 : f32
      %347 = vector.broadcast %cst_99 : f32 to vector<8x128xf32>
      %348 = arith.subf %347, %341 : vector<8x128xf32>
      %349 = arith.mulf %348, %346 : vector<8x128xf32>
      %350 = arith.mulf %341, %316 : vector<8x128xf32>
      %351 = arith.addf %349, %350 : vector<8x128xf32>
      %352 = vector.broadcast %317 : i32 to vector<8x1xi32>
      %353 = arith.cmpi slt, %352, %0 : vector<8x1xi32>
      %354 = vector.shape_cast %353 : vector<8x1xi1> to vector<8x1xi1>
      %355 = vector.broadcast %354 : vector<8x1xi1> to vector<8x128xi1>
      %356 = arith.select %355, %351, %316 : vector<8x128xi1>, vector<8x128xf32>
      %c8_i32_100 = arith.constant 8 : i32
      %c0_101 = arith.constant 0 : index
      %c0_102 = arith.constant 0 : index
      %357 = vector.load %arg12[%c0_101, %c0_102] : memref<8x128xf32, #tpu.memory_space<vmem>>, vector<8x128xf32>
      tpu.vector_store %arg12[%c0_101, %c0_102], %356 {strides = array<i32>} : memref<8x128xf32, #tpu.memory_space<vmem>>, vector<8x128xf32>,
    }
    %c0_13 = arith.constant 0 : index
    %c0_14 = arith.constant 0 : index
    %15 = vector.load %arg12[%c0_13, %c0_14] : memref<8x128xf32, #tpu.memory_space<vmem>>, vector<8x128xf32>
    %16 = arith.truncf %15 : vector<8x128xf32> to vector<8x128xbf16>
    %c0_15 = arith.constant 0 : index
    %c0_16 = arith.constant 0 : index
    %17 = vector.load %arg8[%c0_15, %c0_16] : memref<128x128xbf16, #tpu.memory_space<vmem>>, vector<128x128xbf16>
    %cst_17 = arith.constant dense<0.000000e+00> : vector<8x128xf32>
    %18 = tpu.matmul %16, %17, %cst_17 {dimension_numbers = #tpu.dot_dimension_numbers<[1], [0], [0], [1], [0, 0, 1, 1], [], []>} : vector<8x128xbf16>, vector<128x128xbf16>, vector<8x128xf32> -> vector<8x128xf32>
    %c0_18 = arith.constant 0 : index
    %c0_19 = arith.constant 0 : index
    %19 = vector.load %arg9[%c0_18, %c0_19] : memref<1x128xf32, #tpu.memory_space<vmem>>, vector<1x128xf32>
    %20 = vector.broadcast %19 : vector<1x128xf32> to vector<8x128xf32>
    %21 = arith.addf %18, %20 : vector<8x128xf32>
    %c0_20 = arith.constant 0 : index
    %c0_21 = arith.constant 0 : index
    %22 = vector.load %arg10[%c0_20, %c0_21] : memref<8x128xf32, #tpu.memory_space<vmem>>, vector<8x128xf32>
    tpu.vector_store %arg10[%c0_20, %c0_21], %21 {strides = array<i32>} : memref<8x128xf32, #tpu.memory_space<vmem>>, vector<8x128xf32>,
    return
  }
  func.func @transform_0(%arg0: i32, %arg1: memref<1xi32, #tpu.memory_space<smem>>) -> (i32, i32, i32) {
    %c0_i32 = arith.constant 0 : i32
    %c0_i32_0 = arith.constant 0 : i32
    %c0_i32_1 = arith.constant 0 : i32
    return %c0_i32, %arg0, %c0_i32_0 : i32, i32, i32
  }
  func.func @transform_1(%arg0: i32, %arg1: memref<1xi32, #tpu.memory_space<smem>>) -> (i32, i32) {
    %c0_i32 = arith.constant 0 : i32
    %c0_i32_0 = arith.constant 0 : i32
    return %arg0, %c0_i32 : i32, i32
  }
  func.func @transform_2(%arg0: i32, %arg1: memref<1xi32, #tpu.memory_space<smem>>) -> (i32, i32) {
    %c0_i32 = arith.constant 0 : i32
    %c0_i32_0 = arith.constant 0 : i32
    %c0_i32_1 = arith.constant 0 : i32
    return %c0_i32, %c0_i32_0 : i32, i32
  }
  func.func @transform_3(%arg0: i32, %arg1: memref<1xi32, #tpu.memory_space<smem>>) -> (i32, i32) {
    %c0_i32 = arith.constant 0 : i32
    %c0_i32_0 = arith.constant 0 : i32
    %c0_i32_1 = arith.constant 0 : i32
    return %c0_i32, %c0_i32_0 : i32, i32
  }
  func.func @transform_4(%arg0: i32, %arg1: memref<1xi32, #tpu.memory_space<smem>>) -> (i32, i32) {
    %c0_i32 = arith.constant 0 : i32
    %c0_i32_0 = arith.constant 0 : i32
    %c0_i32_1 = arith.constant 0 : i32
    return %c0_i32, %c0_i32_0 : i32, i32
  }
  func.func @transform_5(%arg0: i32, %arg1: memref<1xi32, #tpu.memory_space<smem>>) -> (i32, i32) {
    %c0_i32 = arith.constant 0 : i32
    %c0_i32_0 = arith.constant 0 : i32
    %c0_i32_1 = arith.constant 0 : i32
    return %c0_i32, %c0_i32_0 : i32, i32
  }
  func.func @transform_6(%arg0: i32, %arg1: memref<1xi32, #tpu.memory_space<smem>>) -> (i32, i32) {
    %c0_i32 = arith.constant 0 : i32
    %c0_i32_0 = arith.constant 0 : i32
    %c0_i32_1 = arith.constant 0 : i32
    return %c0_i32, %c0_i32_0 : i32, i32
  }
  func.func @transform_7(%arg0: i32, %arg1: memref<1xi32, #tpu.memory_space<smem>>) -> (i32, i32) {
    %c0_i32 = arith.constant 0 : i32
    %c0_i32_0 = arith.constant 0 : i32
    %c0_i32_1 = arith.constant 0 : i32
    return %c0_i32, %c0_i32_0 : i32, i32
  }
  func.func @transform_8(%arg0: i32, %arg1: memref<1xi32, #tpu.memory_space<smem>>) -> (i32, i32) {
    %c0_i32 = arith.constant 0 : i32
    %c0_i32_0 = arith.constant 0 : i32
    return %arg0, %c0_i32 : i32, i32
  }
}

</mosaic_0001>

<llo_original>
// kernel: tpu_custom_call.1
$region0: #{tpu_custom_call.1}
  #allocation0 [shape = 'u32[]', space=smem, size = 0x4, offset = 0x4, fixed_abs, tag = 'smem constant byte address 0x4 - core index']
  #allocation1 [shape = 'u32[144,128]{1,0:T(1,128)}', space=vmem, size = 0x12000, scoped, tag = 'internal scratch']
  #allocation2 [shape = 'f32[8,8,384]{2,1,0:T(8,128)}', space=vmem, size = 0x18000, scoped, tag = 'scratch operand']
  #allocation3 [shape = 'f32[8,128]{1,0:T(8,128)}', space=vmem, size = 0x1000, scoped, tag = 'scratch operand']
  #allocation4 [shape = 's32[1]{0}', space=sflag, size = 0x4, scoped, tag = 'scoped memory for tpu_custom_call.1']
  #allocation5 [shape = 's32[1]{0:T(128)S(6)}', space=smem, size = 0x200, scoped, tag = 'prefetched SMEM operand 0']
  %s0 = inlined_call_operand.<no memory space> [shape: s32[1], index: 0, kind: input, shape index: {}]
  %s1 = inlined_call_operand.hbm [shape: bf16[8,8,32], index: 1, kind: input, shape index: {}]
  %s2 = inlined_call_operand.vmem [shape: s32[8,1], index: 2, kind: input, shape index: {}]
  %s3 = inlined_call_operand.hbm [shape: bf16[32,384], index: 3, kind: input, shape index: {}]
  %s4 = inlined_call_operand.hbm [shape: bf16[128,384], index: 4, kind: input, shape index: {}]
  %s5 = inlined_call_operand.vmem [shape: f32[1,384], index: 5, kind: input, shape index: {}]
  %s6 = inlined_call_operand.vmem [shape: f32[1,384], index: 6, kind: input, shape index: {}]
  %s7 = inlined_call_operand.hbm [shape: bf16[128,128], index: 7, kind: input, shape index: {}]
  %s8 = inlined_call_operand.vmem [shape: f32[1,128], index: 8, kind: input, shape index: {}]
  %s9 = inlined_call_operand.hbm [shape: f32[8,128], index: 9, kind: output, shape index: {}]
  %s10 = sld [smem:[#allocation0]]
  $region65: #{tpu_custom_call.1} parent=0
    _
  %s12 = ssub.s32 1, %s10
  %s13 = scalar_select 0, %s12, %s10
  %14 = sst [smem:[#allocation5]] %s0
  $region1: #{tpu_custom_call.1} parent=0
    #allocation6 [shape = 'u8[16384]{0}', space=vmem, size = 0x4000, scoped, tag = 'input window, operand 1, single buffered']
    #allocation7 [shape = 's32[1]{0}', space=sflag, size = 0x4, scoped, tag = 'scoped memory for tpu_custom_call.1']
    #allocation8 [shape = 's32[1]{0}', space=sflag, size = 0x4, scoped, tag = 'scoped memory for tpu_custom_call.1']
    #allocation9 [shape = 'u8[24576]{0}', space=vmem, size = 0x6000, scoped, tag = 'input window, operand 3, single buffered']
    #allocation10 [shape = 's32[1]{0}', space=sflag, size = 0x4, scoped, tag = 'scoped memory for tpu_custom_call.1']
    #allocation11 [shape = 'u8[98304]{0}', space=vmem, size = 0x18000, scoped, tag = 'input window, operand 4, single buffered']
    #allocation12 [shape = 'u8[32768]{0}', space=vmem, size = 0x8000, scoped, tag = 'input window, operand 7, single buffered']
    #allocation13 [shape = 's32[1]{0}', space=sflag, size = 0x4, scoped, tag = 'scoped memory for tpu_custom_call.1']
    #allocation14 [shape = 'u8[4096]{0}', space=vmem, size = 0x1000, scoped, tag = 'output window, operand 0, single buffered']
    %15 = vsyncpa [#allocation7], 0
    %16 = vsyncpa [#allocation10], 0
    %17 = vsyncpa [#allocation13], 0
    %18 = vsyncpa [#allocation8], 0
    // Predicated region
    $region2: #{tpu_custom_call.1} parent=1 // pred_check
      _
    $region3: #{tpu_custom_call.1} parent=1 // pred_check_branch
      %20 = sbr.rel (0) target = $region5
    $region4: #{tpu_custom_call.1} parent=1 // pred_region
      %s22 = ssub.s32 512, 512
      %23 = vsyncadd [#allocation7], %s22
      %s24 = sshll.u32 [#allocation6], 4
      %s25 = int_to_ptr.vmem [resolvable:$true] %s24
      %30 = dma.hbm_to_vmem [thread:$0]  %s1, 512, %s25, [#allocation7], 64, 64, 4
    $region5: #{tpu_custom_call.1} parent=1 // pred_fallthru
      _
    // Predicated region
    $region6: #{tpu_custom_call.1} parent=1 // pred_check
      _
    $region7: #{tpu_custom_call.1} parent=1 // pred_check_branch
      %32 = sbr.rel (0) target = $region9
    $region8: #{tpu_custom_call.1} parent=1 // pred_region
      _
    $region9: #{tpu_custom_call.1} parent=1 // pred_fallthru
      _
    // Predicated region
    $region10: #{tpu_custom_call.1} parent=1 // pred_check
      _
    $region11: #{tpu_custom_call.1} parent=1 // pred_check_branch
      %34 = sbr.rel (0) target = $region13
    $region12: #{tpu_custom_call.1} parent=1 // pred_region
      %s36 = ssub.s32 768, 768
      %37 = vsyncadd [#allocation10], %s36
      %s38 = sshll.u32 [#allocation9], 4
      %s39 = int_to_ptr.vmem [resolvable:$true] %s38
      %44 = dma.hbm_to_vmem [thread:$0]  %s3, 768, %s39, [#allocation10], 192, 192, 12
    $region13: #{tpu_custom_call.1} parent=1 // pred_fallthru
      _
    // Predicated region
    $region14: #{tpu_custom_call.1} parent=1 // pred_check
      _
    $region15: #{tpu_custom_call.1} parent=1 // pred_check_branch
      %46 = sbr.rel (0) target = $region17
    $region16: #{tpu_custom_call.1} parent=1 // pred_region
      %s48 = ssub.s32 3072, 3072
      %49 = vsyncadd [#allocation10], %s48
      %s50 = sshll.u32 [#allocation11], 4
      %s51 = int_to_ptr.vmem [resolvable:$true] %s50
      %56 = dma.hbm_to_vmem [thread:$0]  %s4, 3072, %s51, [#allocation10], 192, 192, 12
    $region17: #{tpu_custom_call.1} parent=1 // pred_fallthru
      _
    // Predicated region
    $region18: #{tpu_custom_call.1} parent=1 // pred_check
      _
    $region19: #{tpu_custom_call.1} parent=1 // pred_check_branch
      %58 = sbr.rel (0) target = $region21
    $region20: #{tpu_custom_call.1} parent=1 // pred_region
      _
    $region21: #{tpu_custom_call.1} parent=1 // pred_fallthru
      _
    // Predicated region
    $region22: #{tpu_custom_call.1} parent=1 // pred_check
      _
    $region23: #{tpu_custom_call.1} parent=1 // pred_check_branch
      %60 = sbr.rel (0) target = $region25
    $region24: #{tpu_custom_call.1} parent=1 // pred_region
      _
    $region25: #{tpu_custom_call.1} parent=1 // pred_fallthru
      _
    // Predicated region
    $region26: #{tpu_custom_call.1} parent=1 // pred_check
      _
    $region27: #{tpu_custom_call.1} parent=1 // pred_check_branch
      %62 = sbr.rel (0) target = $region29
    $region28: #{tpu_custom_call.1} parent=1 // pred_region
      %s64 = ssub.s32 1024, 1024
      %65 = vsyncadd [#allocation13], %s64
      %s66 = sshll.u32 [#allocation12], 4
      %s67 = int_to_ptr.vmem [resolvable:$true] %s66
      %72 = dma.hbm_to_vmem [thread:$0]  %s7, 1024, %s67, [#allocation13], 64, 64, 4
    $region29: #{tpu_custom_call.1} parent=1 // pred_fallthru
      _
    // Predicated region
    $region30: #{tpu_custom_call.1} parent=1 // pred_check
      _
    $region31: #{tpu_custom_call.1} parent=1 // pred_check_branch
      %74 = sbr.rel (0) target = $region33
    $region32: #{tpu_custom_call.1} parent=1 // pred_region
      _
    $region33: #{tpu_custom_call.1} parent=1 // pred_fallthru
      _
    // Predicated region
    $region34: #{tpu_custom_call.1} parent=1 // pred_check
      _
    $region35: #{tpu_custom_call.1} parent=1 // pred_check_branch
      %76 = sbr.rel (0) target = $region37
    $region36: #{tpu_custom_call.1} parent=1 // pred_region
      %77 = dma.done [#allocation7], 512
    $region37: #{tpu_custom_call.1} parent=1 // pred_fallthru
      _
    // Predicated region
    $region38: #{tpu_custom_call.1} parent=1 // pred_check
      _
    $region39: #{tpu_custom_call.1} parent=1 // pred_check_branch
      %79 = sbr.rel (0) target = $region41
    $region40: #{tpu_custom_call.1} parent=1 // pred_region
      %80 = dma.done [#allocation10], 768
    $region41: #{tpu_custom_call.1} parent=1 // pred_fallthru
      _
    // Predicated region
    $region42: #{tpu_custom_call.1} parent=1 // pred_check
      _
    $region43: #{tpu_custom_call.1} parent=1 // pred_check_branch
      %82 = sbr.rel (0) target = $region45
    $region44: #{tpu_custom_call.1} parent=1 // pred_region
      %83 = dma.done [#allocation10], 3072
    $region45: #{tpu_custom_call.1} parent=1 // pred_fallthru
      _
    // Predicated region
    $region46: #{tpu_custom_call.1} parent=1 // pred_check
      _
    $region47: #{tpu_custom_call.1} parent=1 // pred_check_branch
      %85 = sbr.rel (0) target = $region49
    $region48: #{tpu_custom_call.1} parent=1 // pred_region
      %86 = dma.done [#allocation13], 1024
    $region49: #{tpu_custom_call.1} parent=1 // pred_fallthru
      _
    %v88 = vld [vmem:[%s2] sm:$0xff]
    %v89 = vld [vmem:[%s5] sm:$0x7]
    %v90 = vld [vmem:[%s6] sm:$0x7]
    %91 = vst [vmem:[#allocation3] sm:$0xff] 0.0
    %s92 = sld [smem:[#allocation5]]
    %s93 = sadd.s32 %s92, 7
    %p94 = scmp.lt.s32.totalorder %s93, 0
    %s95 = ssub.s32 0, %s93
    %s96 = scalar_select %p94, %s95, %s93
    %s97 = sshrl.u32 %s96, 3
    %s98 = ssub.s32 0, %s97
    %s99 = scalar_select %p94, %s98, %s97
    // While loop
    $region50: #{tpu_custom_call.1} parent=1 // loop_pre_header
      _
    $region51: #{tpu_custom_call.1} parent=1 // loop_header
      %s101 = sphi 0, %s103
      %p102 = scmp.ge.s32.totalorder %s101, %s99
    $region52: #{tpu_custom_call.1} parent=1 // loop_header_branch
      %105 = sbr.rel (%p102) target = $region56
    $region53: #{tpu_custom_call.1} parent=1 // loop_body
      %s106 = smul.u32 %s101, 8
      %s107 = smul.addr %s106, 4
      %s108 = scalar_lea.vmem [#allocation6], %s107
      %v109 = vld [vmem:[%s108] sm:$0xf]
      %v110 = vld [vmem:[%s108 + $0x4] sm:$0xf]
      %v111 = vld [vmem:[%s108 + $0x8] sm:$0xf]
      %v112 = vld [vmem:[%s108 + $0xc] sm:$0xf]
      %v113 = vld [vmem:[%s108 + $0x10] sm:$0xf]
      %v114 = vld [vmem:[%s108 + $0x14] sm:$0xf]
      %v115 = vld [vmem:[%s108 + $0x18] sm:$0xf]
      %v116 = vld [vmem:[%s108 + $0x1c] sm:$0xf]
      %v117 = vld [vmem:[#allocation9] sm:$0xff]
      %v118 = vld [vmem:[#allocation9 + $0x8] sm:$0xf]
      %v119 = vld [vmem:[#allocation9 + $0xc] sm:$0xff]
      %v120 = vld [vmem:[#allocation9 + $0x14] sm:$0xf]
      %v121 = vld [vmem:[#allocation9 + $0x18] sm:$0xff]
      %v122 = vld [vmem:[#allocation9 + $0x20] sm:$0xf]
      %v123 = vld [vmem:[#allocation9 + $0x24] sm:$0xff]
      %v124 = vld [vmem:[#allocation9 + $0x2c] sm:$0xf]
      %v126 = vlaneseq
      %v127 = vshrl.u32 %v126, 7
      %v128 = vsub.s32 0, %v127
      %v129 = vrot.slane %v89, %v128
      %v130 = vlaneseq
      %v131 = vshrl.u32 %v130, 7
      %v132 = vsub.s32 1, %v131
      %v133 = vrot.slane %v89, %v132
      %v134 = vlaneseq
      %v135 = vshrl.u32 %v134, 7
      %v136 = vsub.s32 2, %v135
      %v137 = vrot.slane %v89, %v136
      %v149 = vunpack.c.l.b16 %v109
      %v150 = vunpack.c.l.b16 %v110
      %v151 = vunpack.c.l.b16 %v111
      %v152 = vunpack.c.l.b16 %v112
      %v153 = vunpack.c.l.b16 %v113
      %v154 = vunpack.c.l.b16 %v114
      %v155 = vunpack.c.l.b16 %v115
      %v156 = vunpack.c.l.b16 %v116
      %v157 = vpack.c.b16 %v150, %v149
      %v158 = vpack.c.b16 %v152, %v151
      %v159 = vpack.c.b16 %v154, %v153
      %v160 = vpack.c.b16 %v156, %v155
      %v169 = vunpack.c.l.b16 %v117
      %v170 = vunpack.c.h.b16 %v117
      %v171 = vunpack.c.l.b16 %v118
      %v172 = vunpack.c.l.b16 %v119
      %v173 = vunpack.c.h.b16 %v119
      %v174 = vunpack.c.l.b16 %v120
      %v175 = vunpack.c.l.b16 %v121
      %v176 = vunpack.c.h.b16 %v121
      %v177 = vunpack.c.l.b16 %v122
      %v178 = vunpack.c.l.b16 %v123
      %v179 = vunpack.c.h.b16 %v123
      %v180 = vunpack.c.l.b16 %v124
      %v181 = vpack.c.b16 %v172, %v169
      %v182 = vpack.c.b16 %v173, %v170
      %v183 = vpack.c.b16 %v174, %v171
      %v184 = vpack.c.b16 %v178, %v175
      %v185 = vpack.c.b16 %v179, %v176
      %v186 = vpack.c.b16 %v180, %v177
      %vm193 = vcmask 261120
      %v195 = vsel %vm193, %v157, 0
      %v198 = vsel %vm193, %v158, 0
      %v201 = vsel %vm193, %v159, 0
      %v204 = vsel %vm193, %v160, 0
      %206 = vmatprep.subr.bf16.mxu0 0
      %207 = vmatpush1.bf16.msra.mxu0 0
      %208 = vmatprep.subr.bf16.mxu0 0
      %209 = vmatpush1.bf16.msra.mxu0 0
      %210 = vmatprep.subr.bf16.mxu0 0
      %211 = vmatpush1.bf16.msra.mxu0 0
      %212 = vmatprep.subr.bf16.mxu0 0
      %213 = vmatpush1.bf16.msra.mxu0 0
      %214 = vmatprep.subr.bf16.mxu0 0
      %215 = vmatpush1.bf16.msra.mxu0 0
      %216 = vmatprep.subr.bf16.mxu0 0
      %217 = vmatpush1.bf16.msra.mxu0 0
      %218 = vmatprep.subr.bf16.mxu0 %v185
      %219 = vmatpush1.bf16.msra.mxu0 %v184
      %220 = vmatprep.subr.bf16.mxu0 %v182
      %221 = vmatpush1.bf16.msra.mxu0 %v181
      %222 = vmatprep.subr.bf16.mxu0 0
      %223 = vmatpush2.bf16.msra.mxu0 0
      %224 = vmatprep.subr.bf16.mxu0 0
      %225 = vmatpush2.bf16.msra.mxu0 0
      %226 = vmatprep.subr.bf16.mxu0 0
      %227 = vmatpush2.bf16.msra.mxu0 0
      %228 = vmatprep.subr.bf16.mxu0 0
      %229 = vmatpush2.bf16.msra.mxu0 0
      %230 = vmatprep.subr.bf16.mxu0 0
      %231 = vmatpush2.bf16.msra.mxu0 0
      %232 = vmatprep.subr.bf16.mxu0 0
      %233 = vmatpush2.bf16.msra.mxu0 0
      %234 = vmatprep.subr.bf16.mxu0 0
      %235 = vmatpush2.bf16.msra.mxu0 0
      %236 = vmatprep.subr.bf16.mxu0 0
      %237 = vmatpush2.bf16.msra.mxu0 0
      %238 = vmatprep.mubr.bf16.mxu0 0
      %239 = vmatmul.mubr.bf16.gmra.mxu0 %v195
      %v240 = vpop.f32.mrf.mxu0
      %v241 = vadd.f32 %v129, %v240
      %v242 = vpop.f32.mrf.mxu0
      %v243 = vadd.f32 %v133, %v242
      %v244 = vpop.f32.mrf.mxu0
      %v245 = vadd.f32 %v129, %v244
      %v246 = vpop.f32.mrf.mxu0
      %v247 = vadd.f32 %v133, %v246
      %248 = vmatprep.mubr.bf16.mxu0 0
      %249 = vmatmul.mubr.bf16.gmra.mxu0 %v198
      %v250 = vpop.f32.mrf.mxu0
      %v251 = vadd.f32 %v129, %v250
      %v252 = vpop.f32.mrf.mxu0
      %v253 = vadd.f32 %v133, %v252
      %v254 = vpop.f32.mrf.mxu0
      %v255 = vadd.f32 %v129, %v254
      %v256 = vpop.f32.mrf.mxu0
      %v257 = vadd.f32 %v133, %v256
      %258 = vmatprep.mubr.bf16.mxu0 0
      %259 = vmatmul.mubr.bf16.gmra.mxu0 %v201
      %v260 = vpop.f32.mrf.mxu0
      %v261 = vadd.f32 %v129, %v260
      %v262 = vpop.f32.mrf.mxu0
      %v263 = vadd.f32 %v133, %v262
      %v264 = vpop.f32.mrf.mxu0
      %v265 = vadd.f32 %v129, %v264
      %v266 = vpop.f32.mrf.mxu0
      %v267 = vadd.f32 %v133, %v266
      %268 = vmatprep.mubr.bf16.mxu0 0
      %269 = vmatmul.mubr.bf16.gmra.mxu0 %v204
      %v270 = vpop.f32.mrf.mxu0
      %v271 = vadd.f32 %v129, %v270
      %v272 = vpop.f32.mrf.mxu0
      %v273 = vadd.f32 %v133, %v272
      %v274 = vpop.f32.mrf.mxu0
      %v275 = vadd.f32 %v129, %v274
      %v276 = vpop.f32.mrf.mxu0
      %v277 = vadd.f32 %v133, %v276
      %278 = vdwg.mxu0
      %279 = vmatprep.subr.bf16.mxu0 0
      %280 = vmatpush1.bf16.msra.mxu0 0
      %281 = vmatprep.subr.bf16.mxu0 0
      %282 = vmatpush1.bf16.msra.mxu0 0
      %283 = vmatprep.subr.bf16.mxu0 0
      %284 = vmatpush1.bf16.msra.mxu0 0
      %285 = vmatprep.subr.bf16.mxu0 0
      %286 = vmatpush1.bf16.msra.mxu0 0
      %287 = vmatprep.subr.bf16.mxu0 0
      %288 = vmatpush1.bf16.msra.mxu0 0
      %289 = vmatprep.subr.bf16.mxu0 0
      %290 = vmatpush1.bf16.msra.mxu0 0
      %291 = vmatprep.subr.bf16.mxu0 0
      %292 = vmatpush1.bf16.msra.mxu0 %v186
      %293 = vmatprep.subr.bf16.mxu0 0
      %294 = vmatpush1.bf16.msra.mxu0 %v183
      %295 = vmatprep.subr.bf16.mxu0 0
      %296 = vmatpush2.bf16.msra.mxu0 0
      %297 = vmatprep.subr.bf16.mxu0 0
      %298 = vmatpush2.bf16.msra.mxu0 0
      %299 = vmatprep.subr.bf16.mxu0 0
      %300 = vmatpush2.bf16.msra.mxu0 0
      %301 = vmatprep.subr.bf16.mxu0 0
      %302 = vmatpush2.bf16.msra.mxu0 0
      %303 = vmatprep.subr.bf16.mxu0 0
      %304 = vmatpush2.bf16.msra.mxu0 0
      %305 = vmatprep.subr.bf16.mxu0 0
      %306 = vmatpush2.bf16.msra.mxu0 0
      %307 = vmatprep.subr.bf16.mxu0 0
      %308 = vmatpush2.bf16.msra.mxu0 0
      %309 = vmatprep.subr.bf16.mxu0 0
      %310 = vmatpush2.bf16.msra.mxu0 0
      %311 = vmatprep.mubr.bf16.mxu0 0
      %312 = vmatmul.mubr.bf16.gmra.mxu0 %v195
      %v313 = vpop.f32.mrf.mxu0
      %v314 = vadd.f32 %v137, %v313
      %v315 = vpop.f32.mrf.mxu0
      %v316 = vpop.f32.mrf.mxu0
      %v317 = vadd.f32 %v137, %v316
      %v318 = vpop.f32.mrf.mxu0
      %319 = vmatprep.mubr.bf16.mxu0 0
      %320 = vmatmul.mubr.bf16.gmra.mxu0 %v198
      %v321 = vpop.f32.mrf.mxu0
      %v322 = vadd.f32 %v137, %v321
      %v323 = vpop.f32.mrf.mxu0
      %v324 = vpop.f32.mrf.mxu0
      %v325 = vadd.f32 %v137, %v324
      %v326 = vpop.f32.mrf.mxu0
      %327 = vmatprep.mubr.bf16.mxu0 0
      %328 = vmatmul.mubr.bf16.gmra.mxu0 %v201
      %v329 = vpop.f32.mrf.mxu0
      %v330 = vadd.f32 %v137, %v329
      %v331 = vpop.f32.mrf.mxu0
      %v332 = vpop.f32.mrf.mxu0
      %v333 = vadd.f32 %v137, %v332
      %v334 = vpop.f32.mrf.mxu0
      %335 = vmatprep.mubr.bf16.mxu0 0
      %336 = vmatmul.mubr.bf16.gmra.mxu0 %v204
      %v337 = vpop.f32.mrf.mxu0
      %v338 = vadd.f32 %v137, %v337
      %v339 = vpop.f32.mrf.mxu0
      %v340 = vpop.f32.mrf.mxu0
      %v341 = vadd.f32 %v137, %v340
      %v342 = vpop.f32.mrf.mxu0
      %343 = vdwg.mxu0
      %344 = vst [vmem:[#allocation2] sm:$0xff] %v241
      %345 = vst [vmem:[#allocation2 + $0x8] sm:$0xff] %v243
      %346 = vst [vmem:[#allocation2 + $0x10] sm:$0xff] %v314
      %347 = vst [vmem:[#allocation2 + $0x18] sm:$0xff] %v245
      %348 = vst [vmem:[#allocation2 + $0x20] sm:$0xff] %v247
      %349 = vst [vmem:[#allocation2 + $0x28] sm:$0xff] %v317
      %350 = vst [vmem:[#allocation2 + $0x30] sm:$0xff] %v251
      %351 = vst [vmem:[#allocation2 + $0x38] sm:$0xff] %v253
      %352 = vst [vmem:[#allocation2 + $0x40] sm:$0xff] %v322
      %353 = vst [vmem:[#allocation2 + $0x48] sm:$0xff] %v255
      %354 = vst [vmem:[#allocation2 + $0x50] sm:$0xff] %v257
      %355 = vst [vmem:[#allocation2 + $0x58] sm:$0xff] %v325
      %356 = vst [vmem:[#allocation2 + $0x60] sm:$0xff] %v261
      %357 = vst [vmem:[#allocation2 + $0x68] sm:$0xff] %v263
      %358 = vst [vmem:[#allocation2 + $0x70] sm:$0xff] %v330
      %359 = vst [vmem:[#allocation2 + $0x78] sm:$0xff] %v265
      %360 = vst [vmem:[#allocation2 + $0x80] sm:$0xff] %v267
      %361 = vst [vmem:[#allocation2 + $0x88] sm:$0xff] %v333
      %362 = vst [vmem:[#allocation2 + $0x90] sm:$0xff] %v271
      %363 = vst [vmem:[#allocation2 + $0x98] sm:$0xff] %v273
      %364 = vst [vmem:[#allocation2 + $0xa0] sm:$0xff] %v338
      %365 = vst [vmem:[#allocation2 + $0xa8] sm:$0xff] %v275
      %366 = vst [vmem:[#allocation2 + $0xb0] sm:$0xff] %v277
      %367 = vst [vmem:[#allocation2 + $0xb8] sm:$0xff] %v341
      %v368 = vld [vmem:[#allocation3] sm:$0xff]
      %v369 = vld [vmem:[#allocation2] sm:$0xff]
      %v370 = vld [vmem:[#allocation2 + $0x8] sm:$0xff]
      %v371 = vld [vmem:[#allocation2 + $0x10] sm:$0xff]
      %v372 = vpack.c.bf16 %v368, %v368
      %v373 = vld [vmem:[#allocation11] sm:$0xff]
      %v374 = vld [vmem:[#allocation11 + $0x8] sm:$0xf]
      %v375 = vld [vmem:[#allocation11 + $0xc] sm:$0xff]
      %v376 = vld [vmem:[#allocation11 + $0x14] sm:$0xf]
      %v377 = vld [vmem:[#allocation11 + $0x18] sm:$0xff]
      %v378 = vld [vmem:[#allocation11 + $0x20] sm:$0xf]
      %v379 = vld [vmem:[#allocation11 + $0x24] sm:$0xff]
      %v380 = vld [vmem:[#allocation11 + $0x2c] sm:$0xf]
      %v381 = vld [vmem:[#allocation11 + $0x30] sm:$0xff]
      %v382 = vld [vmem:[#allocation11 + $0x38] sm:$0xf]
      %v383 = vld [vmem:[#allocation11 + $0x3c] sm:$0xff]
      %v384 = vld [vmem:[#allocation11 + $0x44] sm:$0xf]
      %v385 = vld [vmem:[#allocation11 + $0x48] sm:$0xff]
      %v386 = vld [vmem:[#allocation11 + $0x50] sm:$0xf]
      %v387 = vld [vmem:[#allocation11 + $0x54] sm:$0xff]
      %v388 = vld [vmem:[#allocation11 + $0x5c] sm:$0xf]
      %v389 = vld [vmem:[#allocation11 + $0x60] sm:$0xff]
      %v390 = vld [vmem:[#allocation11 + $0x68] sm:$0xf]
      %v391 = vld [vmem:[#allocation11 + $0x6c] sm:$0xff]
      %v392 = vld [vmem:[#allocation11 + $0x74] sm:$0xf]
      %v393 = vld [vmem:[#allocation11 + $0x78] sm:$0xff]
      %v394 = vld [vmem:[#allocation11 + $0x80] sm:$0xf]
      %v395 = vld [vmem:[#allocation11 + $0x84] sm:$0xff]
      %v396 = vld [vmem:[#allocation11 + $0x8c] sm:$0xf]
      %v397 = vld [vmem:[#allocation11 + $0x90] sm:$0xff]
      %v398 = vld [vmem:[#allocation11 + $0x98] sm:$0xf]
      %v399 = vld [vmem:[#allocation11 + $0x9c] sm:$0xff]
      %v400 = vld [vmem:[#allocation11 + $0xa4] sm:$0xf]
      %v401 = vld [vmem:[#allocation11 + $0xa8] sm:$0xff]
      %v402 = vld [vmem:[#allocation11 + $0xb0] sm:$0xf]
      %v403 = vld [vmem:[#allocation11 + $0xb4] sm:$0xff]
      %v404 = vld [vmem:[#allocation11 + $0xbc] sm:$0xf]
      %v406 = vlaneseq
      %v407 = vshrl.u32 %v406, 7
      %v408 = vsub.s32 0, %v407
      %v409 = vrot.slane %v90, %v408
      %v410 = vlaneseq
      %v411 = vshrl.u32 %v410, 7
      %v412 = vsub.s32 1, %v411
      %v413 = vrot.slane %v90, %v412
      %v414 = vlaneseq
      %v415 = vshrl.u32 %v414, 7
      %v416 = vsub.s32 2, %v415
      %v417 = vrot.slane %v90, %v416
      %v453 = vunpack.c.l.b16 %v373
      %v454 = vunpack.c.h.b16 %v373
      %v455 = vunpack.c.l.b16 %v374
      %v456 = vunpack.c.l.b16 %v375
      %v457 = vunpack.c.h.b16 %v375
      %v458 = vunpack.c.l.b16 %v376
      %v459 = vunpack.c.l.b16 %v377
      %v460 = vunpack.c.h.b16 %v377
      %v461 = vunpack.c.l.b16 %v378
      %v462 = vunpack.c.l.b16 %v379
      %v463 = vunpack.c.h.b16 %v379
      %v464 = vunpack.c.l.b16 %v380
      %v465 = vunpack.c.l.b16 %v381
      %v466 = vunpack.c.h.b16 %v381
      %v467 = vunpack.c.l.b16 %v382
      %v468 = vunpack.c.l.b16 %v383
      %v469 = vunpack.c.h.b16 %v383
      %v470 = vunpack.c.l.b16 %v384
      %v471 = vunpack.c.l.b16 %v385
      %v472 = vunpack.c.h.b16 %v385
      %v473 = vunpack.c.l.b16 %v386
      %v474 = vunpack.c.l.b16 %v387
      %v475 = vunpack.c.h.b16 %v387
      %v476 = vunpack.c.l.b16 %v388
      %v477 = vunpack.c.l.b16 %v389
      %v478 = vunpack.c.h.b16 %v389
      %v479 = vunpack.c.l.b16 %v390
      %v480 = vunpack.c.l.b16 %v391
      %v481 = vunpack.c.h.b16 %v391
      %v482 = vunpack.c.l.b16 %v392
      %v483 = vunpack.c.l.b16 %v393
      %v484 = vunpack.c.h.b16 %v393
      %v485 = vunpack.c.l.b16 %v394
      %v486 = vunpack.c.l.b16 %v395
      %v487 = vunpack.c.h.b16 %v395
      %v488 = vunpack.c.l.b16 %v396
      %v489 = vunpack.c.l.b16 %v397
      %v490 = vunpack.c.h.b16 %v397
      %v491 = vunpack.c.l.b16 %v398
      %v492 = vunpack.c.l.b16 %v399
      %v493 = vunpack.c.h.b16 %v399
      %v494 = vunpack.c.l.b16 %v400
      %v495 = vunpack.c.l.b16 %v401
      %v496 = vunpack.c.h.b16 %v401
      %v497 = vunpack.c.l.b16 %v402
      %v498 = vunpack.c.l.b16 %v403
      %v499 = vunpack.c.h.b16 %v403
      %v500 = vunpack.c.l.b16 %v404
      %v501 = vpack.c.b16 %v456, %v453
      %v502 = vpack.c.b16 %v457, %v454
      %v503 = vpack.c.b16 %v458, %v455
      %v504 = vpack.c.b16 %v462, %v459
      %v505 = vpack.c.b16 %v463, %v460
      %v506 = vpack.c.b16 %v464, %v461
      %v507 = vpack.c.b16 %v468, %v465
      %v508 = vpack.c.b16 %v469, %v466
      %v509 = vpack.c.b16 %v470, %v467
      %v510 = vpack.c.b16 %v474, %v471
      %v511 = vpack.c.b16 %v475, %v472
      %v512 = vpack.c.b16 %v476, %v473
      %v513 = vpack.c.b16 %v480, %v477
      %v514 = vpack.c.b16 %v481, %v478
      %v515 = vpack.c.b16 %v482, %v479
      %v516 = vpack.c.b16 %v486, %v483
      %v517 = vpack.c.b16 %v487, %v484
      %v518 = vpack.c.b16 %v488, %v485
      %v519 = vpack.c.b16 %v492, %v489
      %v520 = vpack.c.b16 %v493, %v490
      %v521 = vpack.c.b16 %v494, %v491
      %v522 = vpack.c.b16 %v498, %v495
      %v523 = vpack.c.b16 %v499, %v496
      %v524 = vpack.c.b16 %v500, %v497
      %549 = vmatprep.subr.bf16.mxu0 %v523
      %550 = vmatpush1.bf16.msra.mxu0 %v522
      %551 = vmatprep.subr.bf16.mxu0 %v520
      %552 = vmatpush1.bf16.msra.mxu0 %v519
      %553 = vmatprep.subr.bf16.mxu0 %v517
      %554 = vmatpush1.bf16.msra.mxu0 %v516
      %555 = vmatprep.subr.bf16.mxu0 %v514
      %556 = vmatpush1.bf16.msra.mxu0 %v513
      %557 = vmatprep.subr.bf16.mxu0 %v511
      %558 = vmatpush1.bf16.msra.mxu0 %v510
      %559 = vmatprep.subr.bf16.mxu0 %v508
      %560 = vmatpush1.bf16.msra.mxu0 %v507
      %561 = vmatprep.subr.bf16.mxu0 %v505
      %562 = vmatpush1.bf16.msra.mxu0 %v504
      %563 = vmatprep.subr.bf16.mxu0 %v502
      %564 = vmatpush1.bf16.msra.mxu0 %v501
      %565 = vmatprep.subr.bf16.mxu0 0
      %566 = vmatpush2.bf16.msra.mxu0 0
      %567 = vmatprep.subr.bf16.mxu0 0
      %568 = vmatpush2.bf16.msra.mxu0 0
      %569 = vmatprep.subr.bf16.mxu0 0
      %570 = vmatpush2.bf16.msra.mxu0 0
      %571 = vmatprep.subr.bf16.mxu0 0
      %572 = vmatpush2.bf16.msra.mxu0 0
      %573 = vmatprep.subr.bf16.mxu0 0
      %574 = vmatpush2.bf16.msra.mxu0 0
      %575 = vmatprep.subr.bf16.mxu0 0
      %576 = vmatpush2.bf16.msra.mxu0 0
      %577 = vmatprep.subr.bf16.mxu0 0
      %578 = vmatpush2.bf16.msra.mxu0 0
      %579 = vmatprep.subr.bf16.mxu0 0
      %580 = vmatpush2.bf16.msra.mxu0 0
      %581 = vmatprep.mubr.bf16.mxu0 0
      %582 = vmatmul.mubr.bf16.gmra.mxu0 %v372
      %v583 = vpop.f32.mrf.mxu0
      %v584 = vadd.f32 %v409, %v583
      %v585 = vpop.f32.mrf.mxu0
      %v586 = vadd.f32 %v413, %v585
      %v587 = vpop.f32.mrf.mxu0
      %v588 = vpop.f32.mrf.mxu0
      %589 = vdwg.mxu0
      %590 = vmatprep.subr.bf16.mxu0 0
      %591 = vmatpush1.bf16.msra.mxu0 %v524
      %592 = vmatprep.subr.bf16.mxu0 0
      %593 = vmatpush1.bf16.msra.mxu0 %v521
      %594 = vmatprep.subr.bf16.mxu0 0
      %595 = vmatpush1.bf16.msra.mxu0 %v518
      %596 = vmatprep.subr.bf16.mxu0 0
      %597 = vmatpush1.bf16.msra.mxu0 %v515
      %598 = vmatprep.subr.bf16.mxu0 0
      %599 = vmatpush1.bf16.msra.mxu0 %v512
      %600 = vmatprep.subr.bf16.mxu0 0
      %601 = vmatpush1.bf16.msra.mxu0 %v509
      %602 = vmatprep.subr.bf16.mxu0 0
      %603 = vmatpush1.bf16.msra.mxu0 %v506
      %604 = vmatprep.subr.bf16.mxu0 0
      %605 = vmatpush1.bf16.msra.mxu0 %v503
      %606 = vmatprep.subr.bf16.mxu0 0
      %607 = vmatpush2.bf16.msra.mxu0 0
      %608 = vmatprep.subr.bf16.mxu0 0
      %609 = vmatpush2.bf16.msra.mxu0 0
      %610 = vmatprep.subr.bf16.mxu0 0
      %611 = vmatpush2.bf16.msra.mxu0 0
      %612 = vmatprep.subr.bf16.mxu0 0
      %613 = vmatpush2.bf16.msra.mxu0 0
      %614 = vmatprep.subr.bf16.mxu0 0
      %615 = vmatpush2.bf16.msra.mxu0 0
      %616 = vmatprep.subr.bf16.mxu0 0
      %617 = vmatpush2.bf16.msra.mxu0 0
      %618 = vmatprep.subr.bf16.mxu0 0
      %619 = vmatpush2.bf16.msra.mxu0 0
      %620 = vmatprep.subr.bf16.mxu0 0
      %621 = vmatpush2.bf16.msra.mxu0 0
      %622 = vmatprep.mubr.bf16.mxu0 0
      %623 = vmatmul.mubr.bf16.gmra.mxu0 %v372
      %v624 = vpop.f32.mrf.mxu0
      %v625 = vadd.f32 %v417, %v624
      %v626 = vpop.f32.mrf.mxu0
      %v627 = vpop.f32.mrf.mxu0
      %v628 = vpop.f32.mrf.mxu0
      %629 = vdwg.mxu0
      %v630 = vadd.f32 %v369, %v584
      %v631 = vxor.u32 %v630, 2147483648
      %v632 = vmul.f32 %v631, 1.442695
      %v633 = vpow.pop %v632
      %v634 = vadd.f32 %v633, 1.0
      %v635 = vrcp.pop %v634
      %v636 = vmul.f32 1.0, %v635
      %v637 = vadd.f32 %v370, %v586
      %v638 = vxor.u32 %v637, 2147483648
      %v639 = vmul.f32 %v638, 1.442695
      %v640 = vpow.pop %v639
      %v641 = vadd.f32 %v640, 1.0
      %v642 = vrcp.pop %v641
      %v643 = vmul.f32 1.0, %v642
      %v644 = vmul.f32 %v636, %v625
      %v645 = vadd.f32 %v371, %v644
      %v646 = vtanh.pop %v645
      %v647 = vsub.f32 1.0, %v643
      %v648 = vmul.f32 %v647, %v646
      %v649 = vmul.f32 %v643, %v368
      %v650 = vadd.f32 %v648, %v649
      %v651 = vstv %s106
      %vm652 = vcmp.lt.s32.totalorder %v651, %v88
      %v653 = vsel %vm652, 1, 0
      %654 = vset.pattern.permute.xlu0 0
      %655 = vperm.xlu0 %654, %v653
      %v656 = vpop.permute.xlu0 %655
      %vm657 = vcmp.eq.s32.totalorder %v656, 1
      %v658 = vsel %vm657, %v650, %v368
      %s659 = sadd.s32 %s106, 1
      %s660 = scalar_lea.vmem [#allocation2], 24
      %v661 = vld [vmem:[%s660] sm:$0xff]
      %v662 = vld [vmem:[%s660 + $0x8] sm:$0xff]
      %v663 = vld [vmem:[%s660 + $0x10] sm:$0xff]
      %v664 = vpack.c.bf16 %v658, %v658
      %665 = vmatprep.subr.bf16.mxu0 %v523
      %666 = vmatpush1.bf16.msra.mxu0 %v522
      %667 = vmatprep.subr.bf16.mxu0 %v520
      %668 = vmatpush1.bf16.msra.mxu0 %v519
      %669 = vmatprep.subr.bf16.mxu0 %v517
      %670 = vmatpush1.bf16.msra.mxu0 %v516
      %671 = vmatprep.subr.bf16.mxu0 %v514
      %672 = vmatpush1.bf16.msra.mxu0 %v513
      %673 = vmatprep.subr.bf16.mxu0 %v511
      %674 = vmatpush1.bf16.msra.mxu0 %v510
      %675 = vmatprep.subr.bf16.mxu0 %v508
      %676 = vmatpush1.bf16.msra.mxu0 %v507
      %677 = vmatprep.subr.bf16.mxu0 %v505
      %678 = vmatpush1.bf16.msra.mxu0 %v504
      %679 = vmatprep.subr.bf16.mxu0 %v502
      %680 = vmatpush1.bf16.msra.mxu0 %v501
      %681 = vmatprep.subr.bf16.mxu0 0
      %682 = vmatpush2.bf16.msra.mxu0 0
      %683 = vmatprep.subr.bf16.mxu0 0
      %684 = vmatpush2.bf16.msra.mxu0 0
      %685 = vmatprep.subr.bf16.mxu0 0
      %686 = vmatpush2.bf16.msra.mxu0 0
      %687 = vmatprep.subr.bf16.mxu0 0
      %688 = vmatpush2.bf16.msra.mxu0 0
      %689 = vmatprep.subr.bf16.mxu0 0
      %690 = vmatpush2.bf16.msra.mxu0 0
      %691 = vmatprep.subr.bf16.mxu0 0
      %692 = vmatpush2.bf16.msra.mxu0 0
      %693 = vmatprep.subr.bf16.mxu0 0
      %694 = vmatpush2.bf16.msra.mxu0 0
      %695 = vmatprep.subr.bf16.mxu0 0
      %696 = vmatpush2.bf16.msra.mxu0 0
      %697 = vmatprep.mubr.bf16.mxu0 0
      %698 = vmatmul.mubr.bf16.gmra.mxu0 %v664
      %v699 = vpop.f32.mrf.mxu0
      %v700 = vadd.f32 %v409, %v699
      %v701 = vpop.f32.mrf.mxu0
      %v702 = vadd.f32 %v413, %v701
      %v703 = vpop.f32.mrf.mxu0
      %v704 = vpop.f32.mrf.mxu0
      %705 = vdwg.mxu0
      %706 = vmatprep.subr.bf16.mxu0 0
      %707 = vmatpush1.bf16.msra.mxu0 %v524
      %708 = vmatprep.subr.bf16.mxu0 0
      %709 = vmatpush1.bf16.msra.mxu0 %v521
      %710 = vmatprep.subr.bf16.mxu0 0
      %711 = vmatpush1.bf16.msra.mxu0 %v518
      %712 = vmatprep.subr.bf16.mxu0 0
      %713 = vmatpush1.bf16.msra.mxu0 %v515
      %714 = vmatprep.subr.bf16.mxu0 0
      %715 = vmatpush1.bf16.msra.mxu0 %v512
      %716 = vmatprep.subr.bf16.mxu0 0
      %717 = vmatpush1.bf16.msra.mxu0 %v509
      %718 = vmatprep.subr.bf16.mxu0 0
      %719 = vmatpush1.bf16.msra.mxu0 %v506
      %720 = vmatprep.subr.bf16.mxu0 0
      %721 = vmatpush1.bf16.msra.mxu0 %v503
      %722 = vmatprep.subr.bf16.mxu0 0
      %723 = vmatpush2.bf16.msra.mxu0 0
      %724 = vmatprep.subr.bf16.mxu0 0
      %725 = vmatpush2.bf16.msra.mxu0 0
      %726 = vmatprep.subr.bf16.mxu0 0
      %727 = vmatpush2.bf16.msra.mxu0 0
      %728 = vmatprep.subr.bf16.mxu0 0
      %729 = vmatpush2.bf16.msra.mxu0 0
      %730 = vmatprep.subr.bf16.mxu0 0
      %731 = vmatpush2.bf16.msra.mxu0 0
      %732 = vmatprep.subr.bf16.mxu0 0
      %733 = vmatpush2.bf16.msra.mxu0 0
      %734 = vmatprep.subr.bf16.mxu0 0
      %735 = vmatpush2.bf16.msra.mxu0 0
      %736 = vmatprep.subr.bf16.mxu0 0
      %737 = vmatpush2.bf16.msra.mxu0 0
      %738 = vmatprep.mubr.bf16.mxu0 0
      %739 = vmatmul.mubr.bf16.gmra.mxu0 %v664
      %v740 = vpop.f32.mrf.mxu0
      %v741 = vadd.f32 %v417, %v740
      %v742 = vpop.f32.mrf.mxu0
      %v743 = vpop.f32.mrf.mxu0
      %v744 = vpop.f32.mrf.mxu0
      %745 = vdwg.mxu0
      %v746 = vadd.f32 %v661, %v700
      %v747 = vxor.u32 %v746, 2147483648
      %v748 = vmul.f32 %v747, 1.442695
      %v749 = vpow.pop %v748
      %v750 = vadd.f32 %v749, 1.0
      %v751 = vrcp.pop %v750
      %v752 = vmul.f32 1.0, %v751
      %v753 = vadd.f32 %v662, %v702
      %v754 = vxor.u32 %v753, 2147483648
      %v755 = vmul.f32 %v754, 1.442695
      %v756 = vpow.pop %v755
      %v757 = vadd.f32 %v756, 1.0
      %v758 = vrcp.pop %v757
      %v759 = vmul.f32 1.0, %v758
      %v760 = vmul.f32 %v752, %v741
      %v761 = vadd.f32 %v663, %v760
      %v762 = vtanh.pop %v761
      %v763 = vsub.f32 1.0, %v759
      %v764 = vmul.f32 %v763, %v762
      %v765 = vmul.f32 %v759, %v658
      %v766 = vadd.f32 %v764, %v765
      %v767 = vstv %s659
      %vm768 = vcmp.lt.s32.totalorder %v767, %v88
      %v769 = vsel %vm768, 1, 0
      %770 = vset.pattern.permute.xlu0 0
      %771 = vperm.xlu0 %770, %v769
      %v772 = vpop.permute.xlu0 %771
      %vm773 = vcmp.eq.s32.totalorder %v772, 1
      %v774 = vsel %vm773, %v766, %v658
      %s775 = sadd.s32 %s106, 2
      %s776 = scalar_lea.vmem [#allocation2], 48
      %v777 = vld [vmem:[%s776] sm:$0xff]
      %v778 = vld [vmem:[%s776 + $0x8] sm:$0xff]
      %v779 = vld [vmem:[%s776 + $0x10] sm:$0xff]
      %v780 = vpack.c.bf16 %v774, %v774
      %781 = vmatprep.subr.bf16.mxu0 %v523
      %782 = vmatpush1.bf16.msra.mxu0 %v522
      %783 = vmatprep.subr.bf16.mxu0 %v520
      %784 = vmatpush1.bf16.msra.mxu0 %v519
      %785 = vmatprep.subr.bf16.mxu0 %v517
      %786 = vmatpush1.bf16.msra.mxu0 %v516
      %787 = vmatprep.subr.bf16.mxu0 %v514
      %788 = vmatpush1.bf16.msra.mxu0 %v513
      %789 = vmatprep.subr.bf16.mxu0 %v511
      %790 = vmatpush1.bf16.msra.mxu0 %v510
      %791 = vmatprep.subr.bf16.mxu0 %v508
      %792 = vmatpush1.bf16.msra.mxu0 %v507
      %793 = vmatprep.subr.bf16.mxu0 %v505
      %794 = vmatpush1.bf16.msra.mxu0 %v504
      %795 = vmatprep.subr.bf16.mxu0 %v502
      %796 = vmatpush1.bf16.msra.mxu0 %v501
      %797 = vmatprep.subr.bf16.mxu0 0
      %798 = vmatpush2.bf16.msra.mxu0 0
      %799 = vmatprep.subr.bf16.mxu0 0
      %800 = vmatpush2.bf16.msra.mxu0 0
      %801 = vmatprep.subr.bf16.mxu0 0
      %802 = vmatpush2.bf16.msra.mxu0 0
      %803 = vmatprep.subr.bf16.mxu0 0
      %804 = vmatpush2.bf16.msra.mxu0 0
      %805 = vmatprep.subr.bf16.mxu0 0
      %806 = vmatpush2.bf16.msra.mxu0 0
      %807 = vmatprep.subr.bf16.mxu0 0
      %808 = vmatpush2.bf16.msra.mxu0 0
      %809 = vmatprep.subr.bf16.mxu0 0
      %810 = vmatpush2.bf16.msra.mxu0 0
      %811 = vmatprep.subr.bf16.mxu0 0
      %812 = vmatpush2.bf16.msra.mxu0 0
      %813 = vmatprep.mubr.bf16.mxu0 0
      %814 = vmatmul.mubr.bf16.gmra.mxu0 %v780
      %v815 = vpop.f32.mrf.mxu0
      %v816 = vadd.f32 %v409, %v815
      %v817 = vpop.f32.mrf.mxu0
      %v818 = vadd.f32 %v413, %v817
      %v819 = vpop.f32.mrf.mxu0
      %v820 = vpop.f32.mrf.mxu0
      %821 = vdwg.mxu0
      %822 = vmatprep.subr.bf16.mxu0 0
      %823 = vmatpush1.bf16.msra.mxu0 %v524
      %824 = vmatprep.subr.bf16.mxu0 0
      %825 = vmatpush1.bf16.msra.mxu0 %v521
      %826 = vmatprep.subr.bf16.mxu0 0
      %827 = vmatpush1.bf16.msra.mxu0 %v518
      %828 = vmatprep.subr.bf16.mxu0 0
      %829 = vmatpush1.bf16.msra.mxu0 %v515
      %830 = vmatprep.subr.bf16.mxu0 0
      %831 = vmatpush1.bf16.msra.mxu0 %v512
      %832 = vmatprep.subr.bf16.mxu0 0
      %833 = vmatpush1.bf16.msra.mxu0 %v509
      %834 = vmatprep.subr.bf16.mxu0 0
      %835 = vmatpush1.bf16.msra.mxu0 %v506
      %836 = vmatprep.subr.bf16.mxu0 0
      %837 = vmatpush1.bf16.msra.mxu0 %v503
      %838 = vmatprep.subr.bf16.mxu0 0
      %839 = vmatpush2.bf16.msra.mxu0 0
      %840 = vmatprep.subr.bf16.mxu0 0
      %841 = vmatpush2.bf16.msra.mxu0 0
      %842 = vmatprep.subr.bf16.mxu0 0
      %843 = vmatpush2.bf16.msra.mxu0 0
      %844 = vmatprep.subr.bf16.mxu0 0
      %845 = vmatpush2.bf16.msra.mxu0 0
      %846 = vmatprep.subr.bf16.mxu0 0
      %847 = vmatpush2.bf16.msra.mxu0 0
      %848 = vmatprep.subr.bf16.mxu0 0
      %849 = vmatpush2.bf16.msra.mxu0 0
      %850 = vmatprep.subr.bf16.mxu0 0
      %851 = vmatpush2.bf16.msra.mxu0 0
      %852 = vmatprep.subr.bf16.mxu0 0
      %853 = vmatpush2.bf16.msra.mxu0 0
      %854 = vmatprep.mubr.bf16.mxu0 0
      %855 = vmatmul.mubr.bf16.gmra.mxu0 %v780
      %v856 = vpop.f32.mrf.mxu0
      %v857 = vadd.f32 %v417, %v856
      %v858 = vpop.f32.mrf.mxu0
      %v859 = vpop.f32.mrf.mxu0
      %v860 = vpop.f32.mrf.mxu0
      %861 = vdwg.mxu0
      %v862 = vadd.f32 %v777, %v816
      %v863 = vxor.u32 %v862, 2147483648
      %v864 = vmul.f32 %v863, 1.442695
      %v865 = vpow.pop %v864
      %v866 = vadd.f32 %v865, 1.0
      %v867 = vrcp.pop %v866
      %v868 = vmul.f32 1.0, %v867
      %v869 = vadd.f32 %v778, %v818
      %v870 = vxor.u32 %v869, 2147483648
      %v871 = vmul.f32 %v870, 1.442695
      %v872 = vpow.pop %v871
      %v873 = vadd.f32 %v872, 1.0
      %v874 = vrcp.pop %v873
      %v875 = vmul.f32 1.0, %v874
      %v876 = vmul.f32 %v868, %v857
      %v877 = vadd.f32 %v779, %v876
      %v878 = vtanh.pop %v877
      %v879 = vsub.f32 1.0, %v875
      %v880 = vmul.f32 %v879, %v878
      %v881 = vmul.f32 %v875, %v774
      %v882 = vadd.f32 %v880, %v881
      %v883 = vstv %s775
      %vm884 = vcmp.lt.s32.totalorder %v883, %v88
      %v885 = vsel %vm884, 1, 0
      %886 = vset.pattern.permute.xlu0 0
      %887 = vperm.xlu0 %886, %v885
      %v888 = vpop.permute.xlu0 %887
      %vm889 = vcmp.eq.s32.totalorder %v888, 1
      %v890 = vsel %vm889, %v882, %v774
      %s891 = sadd.s32 %s106, 3
      %s892 = scalar_lea.vmem [#allocation2], 72
      %v893 = vld [vmem:[%s892] sm:$0xff]
      %v894 = vld [vmem:[%s892 + $0x8] sm:$0xff]
      %v895 = vld [vmem:[%s892 + $0x10] sm:$0xff]
      %v896 = vpack.c.bf16 %v890, %v890
      %897 = vmatprep.subr.bf16.mxu0 %v523
      %898 = vmatpush1.bf16.msra.mxu0 %v522
      %899 = vmatprep.subr.bf16.mxu0 %v520
      %900 = vmatpush1.bf16.msra.mxu0 %v519
      %901 = vmatprep.subr.bf16.mxu0 %v517
      %902 = vmatpush1.bf16.msra.mxu0 %v516
      %903 = vmatprep.subr.bf16.mxu0 %v514
      %904 = vmatpush1.bf16.msra.mxu0 %v513
      %905 = vmatprep.subr.bf16.mxu0 %v511
      %906 = vmatpush1.bf16.msra.mxu0 %v510
      %907 = vmatprep.subr.bf16.mxu0 %v508
      %908 = vmatpush1.bf16.msra.mxu0 %v507
      %909 = vmatprep.subr.bf16.mxu0 %v505
      %910 = vmatpush1.bf16.msra.mxu0 %v504
      %911 = vmatprep.subr.bf16.mxu0 %v502
      %912 = vmatpush1.bf16.msra.mxu0 %v501
      %913 = vmatprep.subr.bf16.mxu0 0
      %914 = vmatpush2.bf16.msra.mxu0 0
      %915 = vmatprep.subr.bf16.mxu0 0
      %916 = vmatpush2.bf16.msra.mxu0 0
      %917 = vmatprep.subr.bf16.mxu0 0
      %918 = vmatpush2.bf16.msra.mxu0 0
      %919 = vmatprep.subr.bf16.mxu0 0
      %920 = vmatpush2.bf16.msra.mxu0 0
      %921 = vmatprep.subr.bf16.mxu0 0
      %922 = vmatpush2.bf16.msra.mxu0 0
      %923 = vmatprep.subr.bf16.mxu0 0
      %924 = vmatpush2.bf16.msra.mxu0 0
      %925 = vmatprep.subr.bf16.mxu0 0
      %926 = vmatpush2.bf16.msra.mxu0 0
      %927 = vmatprep.subr.bf16.mxu0 0
      %928 = vmatpush2.bf16.msra.mxu0 0
      %929 = vmatprep.mubr.bf16.mxu0 0
      %930 = vmatmul.mubr.bf16.gmra.mxu0 %v896
      %v931 = vpop.f32.mrf.mxu0
      %v932 = vadd.f32 %v409, %v931
      %v933 = vpop.f32.mrf.mxu0
      %v934 = vadd.f32 %v413, %v933
      %v935 = vpop.f32.mrf.mxu0
      %v936 = vpop.f32.mrf.mxu0
      %937 = vdwg.mxu0
      %938 = vmatprep.subr.bf16.mxu0 0
      %939 = vmatpush1.bf16.msra.mxu0 %v524
      %940 = vmatprep.subr.bf16.mxu0 0
      %941 = vmatpush1.bf16.msra.mxu0 %v521
      %942 = vmatprep.subr.bf16.mxu0 0
      %943 = vmatpush1.bf16.msra.mxu0 %v518
      %944 = vmatprep.subr.bf16.mxu0 0
      %945 = vmatpush1.bf16.msra.mxu0 %v515
      %946 = vmatprep.subr.bf16.mxu0 0
      %947 = vmatpush1.bf16.msra.mxu0 %v512
      %948 = vmatprep.subr.bf16.mxu0 0
      %949 = vmatpush1.bf16.msra.mxu0 %v509
      %950 = vmatprep.subr.bf16.mxu0 0
      %951 = vmatpush1.bf16.msra.mxu0 %v506
      %952 = vmatprep.subr.bf16.mxu0 0
      %953 = vmatpush1.bf16.msra.mxu0 %v503
      %954 = vmatprep.subr.bf16.mxu0 0
      %955 = vmatpush2.bf16.msra.mxu0 0
      %956 = vmatprep.subr.bf16.mxu0 0
      %957 = vmatpush2.bf16.msra.mxu0 0
      %958 = vmatprep.subr.bf16.mxu0 0
      %959 = vmatpush2.bf16.msra.mxu0 0
      %960 = vmatprep.subr.bf16.mxu0 0
      %961 = vmatpush2.bf16.msra.mxu0 0
      %962 = vmatprep.subr.bf16.mxu0 0
      %963 = vmatpush2.bf16.msra.mxu0 0
      %964 = vmatprep.subr.bf16.mxu0 0
      %965 = vmatpush2.bf16.msra.mxu0 0
      %966 = vmatprep.subr.bf16.mxu0 0
      %967 = vmatpush2.bf16.msra.mxu0 0
      %968 = vmatprep.subr.bf16.mxu0 0
      %969 = vmatpush2.bf16.msra.mxu0 0
      %970 = vmatprep.mubr.bf16.mxu0 0
      %971 = vmatmul.mubr.bf16.gmra.mxu0 %v896
      %v972 = vpop.f32.mrf.mxu0
      %v973 = vadd.f32 %v417, %v972
      %v974 = vpop.f32.mrf.mxu0
      %v975 = vpop.f32.mrf.mxu0
      %v976 = vpop.f32.mrf.mxu0
      %977 = vdwg.mxu0
      %v978 = vadd.f32 %v893, %v932
      %v979 = vxor.u32 %v978, 2147483648
      %v980 = vmul.f32 %v979, 1.442695
      %v981 = vpow.pop %v980
      %v982 = vadd.f32 %v981, 1.0
      %v983 = vrcp.pop %v982
      %v984 = vmul.f32 1.0, %v983
      %v985 = vadd.f32 %v894, %v934
      %v986 = vxor.u32 %v985, 2147483648
      %v987 = vmul.f32 %v986, 1.442695
      %v988 = vpow.pop %v987
      %v989 = vadd.f32 %v988, 1.0
      %v990 = vrcp.pop %v989
      %v991 = vmul.f32 1.0, %v990
      %v992 = vmul.f32 %v984, %v973
      %v993 = vadd.f32 %v895, %v992
      %v994 = vtanh.pop %v993
      %v995 = vsub.f32 1.0, %v991
      %v996 = vmul.f32 %v995, %v994
      %v997 = vmul.f32 %v991, %v890
      %v998 = vadd.f32 %v996, %v997
      %v999 = vstv %s891
      %vm1000 = vcmp.lt.s32.totalorder %v999, %v88
      %v1001 = vsel %vm1000, 1, 0
      %1002 = vset.pattern.permute.xlu0 0
      %1003 = vperm.xlu0 %1002, %v1001
      %v1004 = vpop.permute.xlu0 %1003
      %vm1005 = vcmp.eq.s32.totalorder %v1004, 1
      %v1006 = vsel %vm1005, %v998, %v890
      %s1007 = sadd.s32 %s106, 4
      %s1008 = scalar_lea.vmem [#allocation2], 96
      %v1009 = vld [vmem:[%s1008] sm:$0xff]
      %v1010 = vld [vmem:[%s1008 + $0x8] sm:$0xff]
      %v1011 = vld [vmem:[%s1008 + $0x10] sm:$0xff]
      %v1012 = vpack.c.bf16 %v1006, %v1006
      %1013 = vmatprep.subr.bf16.mxu0 %v523
      %1014 = vmatpush1.bf16.msra.mxu0 %v522
      %1015 = vmatprep.subr.bf16.mxu0 %v520
      %1016 = vmatpush1.bf16.msra.mxu0 %v519
      %1017 = vmatprep.subr.bf16.mxu0 %v517
      %1018 = vmatpush1.bf16.msra.mxu0 %v516
      %1019 = vmatprep.subr.bf16.mxu0 %v514
      %1020 = vmatpush1.bf16.msra.mxu0 %v513
      %1021 = vmatprep.subr.bf16.mxu0 %v511
      %1022 = vmatpush1.bf16.msra.mxu0 %v510
      %1023 = vmatprep.subr.bf16.mxu0 %v508
      %1024 = vmatpush1.bf16.msra.mxu0 %v507
      %1025 = vmatprep.subr.bf16.mxu0 %v505
      %1026 = vmatpush1.bf16.msra.mxu0 %v504
      %1027 = vmatprep.subr.bf16.mxu0 %v502
      %1028 = vmatpush1.bf16.msra.mxu0 %v501
      %1029 = vmatprep.subr.bf16.mxu0 0
      %1030 = vmatpush2.bf16.msra.mxu0 0
      %1031 = vmatprep.subr.bf16.mxu0 0
      %1032 = vmatpush2.bf16.msra.mxu0 0
      %1033 = vmatprep.subr.bf16.mxu0 0
      %1034 = vmatpush2.bf16.msra.mxu0 0
      %1035 = vmatprep.subr.bf16.mxu0 0
      %1036 = vmatpush2.bf16.msra.mxu0 0
      %1037 = vmatprep.subr.bf16.mxu0 0
      %1038 = vmatpush2.bf16.msra.mxu0 0
      %1039 = vmatprep.subr.bf16.mxu0 0
      %1040 = vmatpush2.bf16.msra.mxu0 0
      %1041 = vmatprep.subr.bf16.mxu0 0
      %1042 = vmatpush2.bf16.msra.mxu0 0
      %1043 = vmatprep.subr.bf16.mxu0 0
      %1044 = vmatpush2.bf16.msra.mxu0 0
      %1045 = vmatprep.mubr.bf16.mxu0 0
      %1046 = vmatmul.mubr.bf16.gmra.mxu0 %v1012
      %v1047 = vpop.f32.mrf.mxu0
      %v1048 = vadd.f32 %v409, %v1047
      %v1049 = vpop.f32.mrf.mxu0
      %v1050 = vadd.f32 %v413, %v1049
      %v1051 = vpop.f32.mrf.mxu0
      %v1052 = vpop.f32.mrf.mxu0
      %1053 = vdwg.mxu0
      %1054 = vmatprep.subr.bf16.mxu0 0
      %1055 = vmatpush1.bf16.msra.mxu0 %v524
      %1056 = vmatprep.subr.bf16.mxu0 0
      %1057 = vmatpush1.bf16.msra.mxu0 %v521
      %1058 = vmatprep.subr.bf16.mxu0 0
      %1059 = vmatpush1.bf16.msra.mxu0 %v518
      %1060 = vmatprep.subr.bf16.mxu0 0
      %1061 = vmatpush1.bf16.msra.mxu0 %v515
      %1062 = vmatprep.subr.bf16.mxu0 0
      %1063 = vmatpush1.bf16.msra.mxu0 %v512
      %1064 = vmatprep.subr.bf16.mxu0 0
      %1065 = vmatpush1.bf16.msra.mxu0 %v509
      %1066 = vmatprep.subr.bf16.mxu0 0
      %1067 = vmatpush1.bf16.msra.mxu0 %v506
      %1068 = vmatprep.subr.bf16.mxu0 0
      %1069 = vmatpush1.bf16.msra.mxu0 %v503
      %1070 = vmatprep.subr.bf16.mxu0 0
      %1071 = vmatpush2.bf16.msra.mxu0 0
      %1072 = vmatprep.subr.bf16.mxu0 0
      %1073 = vmatpush2.bf16.msra.mxu0 0
      %1074 = vmatprep.subr.bf16.mxu0 0
      %1075 = vmatpush2.bf16.msra.mxu0 0
      %1076 = vmatprep.subr.bf16.mxu0 0
      %1077 = vmatpush2.bf16.msra.mxu0 0
      %1078 = vmatprep.subr.bf16.mxu0 0
      %1079 = vmatpush2.bf16.msra.mxu0 0
      %1080 = vmatprep.subr.bf16.mxu0 0
      %1081 = vmatpush2.bf16.msra.mxu0 0
      %1082 = vmatprep.subr.bf16.mxu0 0
      %1083 = vmatpush2.bf16.msra.mxu0 0
      %1084 = vmatprep.subr.bf16.mxu0 0
      %1085 = vmatpush2.bf16.msra.mxu0 0
      %1086 = vmatprep.mubr.bf16.mxu0 0
      %1087 = vmatmul.mubr.bf16.gmra.mxu0 %v1012
      %v1088 = vpop.f32.mrf.mxu0
      %v1089 = vadd.f32 %v417, %v1088
      %v1090 = vpop.f32.mrf.mxu0
      %v1091 = vpop.f32.mrf.mxu0
      %v1092 = vpop.f32.mrf.mxu0
      %1093 = vdwg.mxu0
      %v1094 = vadd.f32 %v1009, %v1048
      %v1095 = vxor.u32 %v1094, 2147483648
      %v1096 = vmul.f32 %v1095, 1.442695
      %v1097 = vpow.pop %v1096
      %v1098 = vadd.f32 %v1097, 1.0
      %v1099 = vrcp.pop %v1098
      %v1100 = vmul.f32 1.0, %v1099
      %v1101 = vadd.f32 %v1010, %v1050
      %v1102 = vxor.u32 %v1101, 2147483648
      %v1103 = vmul.f32 %v1102, 1.442695
      %v1104 = vpow.pop %v1103
      %v1105 = vadd.f32 %v1104, 1.0
      %v1106 = vrcp.pop %v1105
      %v1107 = vmul.f32 1.0, %v1106
      %v1108 = vmul.f32 %v1100, %v1089
      %v1109 = vadd.f32 %v1011, %v1108
      %v1110 = vtanh.pop %v1109
      %v1111 = vsub.f32 1.0, %v1107
      %v1112 = vmul.f32 %v1111, %v1110
      %v1113 = vmul.f32 %v1107, %v1006
      %v1114 = vadd.f32 %v1112, %v1113
      %v1115 = vstv %s1007
      %vm1116 = vcmp.lt.s32.totalorder %v1115, %v88
      %v1117 = vsel %vm1116, 1, 0
      %1118 = vset.pattern.permute.xlu0 0
      %1119 = vperm.xlu0 %1118, %v1117
      %v1120 = vpop.permute.xlu0 %1119
      %vm1121 = vcmp.eq.s32.totalorder %v1120, 1
      %v1122 = vsel %vm1121, %v1114, %v1006
      %s1123 = sadd.s32 %s106, 5
      %s1124 = scalar_lea.vmem [#allocation2], 120
      %v1125 = vld [vmem:[%s1124] sm:$0xff]
      %v1126 = vld [vmem:[%s1124 + $0x8] sm:$0xff]
      %v1127 = vld [vmem:[%s1124 + $0x10] sm:$0xff]
      %v1128 = vpack.c.bf16 %v1122, %v1122
      %1129 = vmatprep.subr.bf16.mxu0 %v523
      %1130 = vmatpush1.bf16.msra.mxu0 %v522
      %1131 = vmatprep.subr.bf16.mxu0 %v520
      %1132 = vmatpush1.bf16.msra.mxu0 %v519
      %1133 = vmatprep.subr.bf16.mxu0 %v517
      %1134 = vmatpush1.bf16.msra.mxu0 %v516
      %1135 = vmatprep.subr.bf16.mxu0 %v514
      %1136 = vmatpush1.bf16.msra.mxu0 %v513
      %1137 = vmatprep.subr.bf16.mxu0 %v511
      %1138 = vmatpush1.bf16.msra.mxu0 %v510
      %1139 = vmatprep.subr.bf16.mxu0 %v508
      %1140 = vmatpush1.bf16.msra.mxu0 %v507
      %1141 = vmatprep.subr.bf16.mxu0 %v505
      %1142 = vmatpush1.bf16.msra.mxu0 %v504
      %1143 = vmatprep.subr.bf16.mxu0 %v502
      %1144 = vmatpush1.bf16.msra.mxu0 %v501
      %1145 = vmatprep.subr.bf16.mxu0 0
      %1146 = vmatpush2.bf16.msra.mxu0 0
      %1147 = vmatprep.subr.bf16.mxu0 0
      %1148 = vmatpush2.bf16.msra.mxu0 0
      %1149 = vmatprep.subr.bf16.mxu0 0
      %1150 = vmatpush2.bf16.msra.mxu0 0
      %1151 = vmatprep.subr.bf16.mxu0 0
      %1152 = vmatpush2.bf16.msra.mxu0 0
      %1153 = vmatprep.subr.bf16.mxu0 0
      %1154 = vmatpush2.bf16.msra.mxu0 0
      %1155 = vmatprep.subr.bf16.mxu0 0
      %1156 = vmatpush2.bf16.msra.mxu0 0
      %1157 = vmatprep.subr.bf16.mxu0 0
      %1158 = vmatpush2.bf16.msra.mxu0 0
      %1159 = vmatprep.subr.bf16.mxu0 0
      %1160 = vmatpush2.bf16.msra.mxu0 0
      %1161 = vmatprep.mubr.bf16.mxu0 0
      %1162 = vmatmul.mubr.bf16.gmra.mxu0 %v1128
      %v1163 = vpop.f32.mrf.mxu0
      %v1164 = vadd.f32 %v409, %v1163
      %v1165 = vpop.f32.mrf.mxu0
      %v1166 = vadd.f32 %v413, %v1165
      %v1167 = vpop.f32.mrf.mxu0
      %v1168 = vpop.f32.mrf.mxu0
      %1169 = vdwg.mxu0
      %1170 = vmatprep.subr.bf16.mxu0 0
      %1171 = vmatpush1.bf16.msra.mxu0 %v524
      %1172 = vmatprep.subr.bf16.mxu0 0
      %1173 = vmatpush1.bf16.msra.mxu0 %v521
      %1174 = vmatprep.subr.bf16.mxu0 0
      %1175 = vmatpush1.bf16.msra.mxu0 %v518
      %1176 = vmatprep.subr.bf16.mxu0 0
      %1177 = vmatpush1.bf16.msra.mxu0 %v515
      %1178 = vmatprep.subr.bf16.mxu0 0
      %1179 = vmatpush1.bf16.msra.mxu0 %v512
      %1180 = vmatprep.subr.bf16.mxu0 0
      %1181 = vmatpush1.bf16.msra.mxu0 %v509
      %1182 = vmatprep.subr.bf16.mxu0 0
      %1183 = vmatpush1.bf16.msra.mxu0 %v506
      %1184 = vmatprep.subr.bf16.mxu0 0
      %1185 = vmatpush1.bf16.msra.mxu0 %v503
      %1186 = vmatprep.subr.bf16.mxu0 0
      %1187 = vmatpush2.bf16.msra.mxu0 0
      %1188 = vmatprep.subr.bf16.mxu0 0
      %1189 = vmatpush2.bf16.msra.mxu0 0
      %1190 = vmatprep.subr.bf16.mxu0 0
      %1191 = vmatpush2.bf16.msra.mxu0 0
      %1192 = vmatprep.subr.bf16.mxu0 0
      %1193 = vmatpush2.bf16.msra.mxu0 0
      %1194 = vmatprep.subr.bf16.mxu0 0
      %1195 = vmatpush2.bf16.msra.mxu0 0
      %1196 = vmatprep.subr.bf16.mxu0 0
      %1197 = vmatpush2.bf16.msra.mxu0 0
      %1198 = vmatprep.subr.bf16.mxu0 0
      %1199 = vmatpush2.bf16.msra.mxu0 0
      %1200 = vmatprep.subr.bf16.mxu0 0
      %1201 = vmatpush2.bf16.msra.mxu0 0
      %1202 = vmatprep.mubr.bf16.mxu0 0
      %1203 = vmatmul.mubr.bf16.gmra.mxu0 %v1128
      %v1204 = vpop.f32.mrf.mxu0
      %v1205 = vadd.f32 %v417, %v1204
      %v1206 = vpop.f32.mrf.mxu0
      %v1207 = vpop.f32.mrf.mxu0
      %v1208 = vpop.f32.mrf.mxu0
      %1209 = vdwg.mxu0
      %v1210 = vadd.f32 %v1125, %v1164
      %v1211 = vxor.u32 %v1210, 2147483648
      %v1212 = vmul.f32 %v1211, 1.442695
      %v1213 = vpow.pop %v1212
      %v1214 = vadd.f32 %v1213, 1.0
      %v1215 = vrcp.pop %v1214
      %v1216 = vmul.f32 1.0, %v1215
      %v1217 = vadd.f32 %v1126, %v1166
      %v1218 = vxor.u32 %v1217, 2147483648
      %v1219 = vmul.f32 %v1218, 1.442695
      %v1220 = vpow.pop %v1219
      %v1221 = vadd.f32 %v1220, 1.0
      %v1222 = vrcp.pop %v1221
      %v1223 = vmul.f32 1.0, %v1222
      %v1224 = vmul.f32 %v1216, %v1205
      %v1225 = vadd.f32 %v1127, %v1224
      %v1226 = vtanh.pop %v1225
      %v1227 = vsub.f32 1.0, %v1223
      %v1228 = vmul.f32 %v1227, %v1226
      %v1229 = vmul.f32 %v1223, %v1122
      %v1230 = vadd.f32 %v1228, %v1229
      %v1231 = vstv %s1123
      %vm1232 = vcmp.lt.s32.totalorder %v1231, %v88
      %v1233 = vsel %vm1232, 1, 0
      %1234 = vset.pattern.permute.xlu0 0
      %1235 = vperm.xlu0 %1234, %v1233
      %v1236 = vpop.permute.xlu0 %1235
      %vm1237 = vcmp.eq.s32.totalorder %v1236, 1
      %v1238 = vsel %vm1237, %v1230, %v1122
      %s1239 = sadd.s32 %s106, 6
      %s1240 = scalar_lea.vmem [#allocation2], 144
      %v1241 = vld [vmem:[%s1240] sm:$0xff]
      %v1242 = vld [vmem:[%s1240 + $0x8] sm:$0xff]
      %v1243 = vld [vmem:[%s1240 + $0x10] sm:$0xff]
      %v1244 = vpack.c.bf16 %v1238, %v1238
      %1245 = vmatprep.subr.bf16.mxu0 %v523
      %1246 = vmatpush1.bf16.msra.mxu0 %v522
      %1247 = vmatprep.subr.bf16.mxu0 %v520
      %1248 = vmatpush1.bf16.msra.mxu0 %v519
      %1249 = vmatprep.subr.bf16.mxu0 %v517
      %1250 = vmatpush1.bf16.msra.mxu0 %v516
      %1251 = vmatprep.subr.bf16.mxu0 %v514
      %1252 = vmatpush1.bf16.msra.mxu0 %v513
      %1253 = vmatprep.subr.bf16.mxu0 %v511
      %1254 = vmatpush1.bf16.msra.mxu0 %v510
      %1255 = vmatprep.subr.bf16.mxu0 %v508
      %1256 = vmatpush1.bf16.msra.mxu0 %v507
      %1257 = vmatprep.subr.bf16.mxu0 %v505
      %1258 = vmatpush1.bf16.msra.mxu0 %v504
      %1259 = vmatprep.subr.bf16.mxu0 %v502
      %1260 = vmatpush1.bf16.msra.mxu0 %v501
      %1261 = vmatprep.subr.bf16.mxu0 0
      %1262 = vmatpush2.bf16.msra.mxu0 0
      %1263 = vmatprep.subr.bf16.mxu0 0
      %1264 = vmatpush2.bf16.msra.mxu0 0
      %1265 = vmatprep.subr.bf16.mxu0 0
      %1266 = vmatpush2.bf16.msra.mxu0 0
      %1267 = vmatprep.subr.bf16.mxu0 0
      %1268 = vmatpush2.bf16.msra.mxu0 0
      %1269 = vmatprep.subr.bf16.mxu0 0
      %1270 = vmatpush2.bf16.msra.mxu0 0
      %1271 = vmatprep.subr.bf16.mxu0 0
      %1272 = vmatpush2.bf16.msra.mxu0 0
      %1273 = vmatprep.subr.bf16.mxu0 0
      %1274 = vmatpush2.bf16.msra.mxu0 0
      %1275 = vmatprep.subr.bf16.mxu0 0
      %1276 = vmatpush2.bf16.msra.mxu0 0
      %1277 = vmatprep.mubr.bf16.mxu0 0
      %1278 = vmatmul.mubr.bf16.gmra.mxu0 %v1244
      %v1279 = vpop.f32.mrf.mxu0
      %v1280 = vadd.f32 %v409, %v1279
      %v1281 = vpop.f32.mrf.mxu0
      %v1282 = vadd.f32 %v413, %v1281
      %v1283 = vpop.f32.mrf.mxu0
      %v1284 = vpop.f32.mrf.mxu0
      %1285 = vdwg.mxu0
      %1286 = vmatprep.subr.bf16.mxu0 0
      %1287 = vmatpush1.bf16.msra.mxu0 %v524
      %1288 = vmatprep.subr.bf16.mxu0 0
      %1289 = vmatpush1.bf16.msra.mxu0 %v521
      %1290 = vmatprep.subr.bf16.mxu0 0
      %1291 = vmatpush1.bf16.msra.mxu0 %v518
      %1292 = vmatprep.subr.bf16.mxu0 0
      %1293 = vmatpush1.bf16.msra.mxu0 %v515
      %1294 = vmatprep.subr.bf16.mxu0 0
      %1295 = vmatpush1.bf16.msra.mxu0 %v512
      %1296 = vmatprep.subr.bf16.mxu0 0
      %1297 = vmatpush1.bf16.msra.mxu0 %v509
      %1298 = vmatprep.subr.bf16.mxu0 0
      %1299 = vmatpush1.bf16.msra.mxu0 %v506
      %1300 = vmatprep.subr.bf16.mxu0 0
      %1301 = vmatpush1.bf16.msra.mxu0 %v503
      %1302 = vmatprep.subr.bf16.mxu0 0
      %1303 = vmatpush2.bf16.msra.mxu0 0
      %1304 = vmatprep.subr.bf16.mxu0 0
      %1305 = vmatpush2.bf16.msra.mxu0 0
      %1306 = vmatprep.subr.bf16.mxu0 0
      %1307 = vmatpush2.bf16.msra.mxu0 0
      %1308 = vmatprep.subr.bf16.mxu0 0
      %1309 = vmatpush2.bf16.msra.mxu0 0
      %1310 = vmatprep.subr.bf16.mxu0 0
      %1311 = vmatpush2.bf16.msra.mxu0 0
      %1312 = vmatprep.subr.bf16.mxu0 0
      %1313 = vmatpush2.bf16.msra.mxu0 0
      %1314 = vmatprep.subr.bf16.mxu0 0
      %1315 = vmatpush2.bf16.msra.mxu0 0
      %1316 = vmatprep.subr.bf16.mxu0 0
      %1317 = vmatpush2.bf16.msra.mxu0 0
      %1318 = vmatprep.mubr.bf16.mxu0 0
      %1319 = vmatmul.mubr.bf16.gmra.mxu0 %v1244
      %v1320 = vpop.f32.mrf.mxu0
      %v1321 = vadd.f32 %v417, %v1320
      %v1322 = vpop.f32.mrf.mxu0
      %v1323 = vpop.f32.mrf.mxu0
      %v1324 = vpop.f32.mrf.mxu0
      %1325 = vdwg.mxu0
      %v1326 = vadd.f32 %v1241, %v1280
      %v1327 = vxor.u32 %v1326, 2147483648
      %v1328 = vmul.f32 %v1327, 1.442695
      %v1329 = vpow.pop %v1328
      %v1330 = vadd.f32 %v1329, 1.0
      %v1331 = vrcp.pop %v1330
      %v1332 = vmul.f32 1.0, %v1331
      %v1333 = vadd.f32 %v1242, %v1282
      %v1334 = vxor.u32 %v1333, 2147483648
      %v1335 = vmul.f32 %v1334, 1.442695
      %v1336 = vpow.pop %v1335
      %v1337 = vadd.f32 %v1336, 1.0
      %v1338 = vrcp.pop %v1337
      %v1339 = vmul.f32 1.0, %v1338
      %v1340 = vmul.f32 %v1332, %v1321
      %v1341 = vadd.f32 %v1243, %v1340
      %v1342 = vtanh.pop %v1341
      %v1343 = vsub.f32 1.0, %v1339
      %v1344 = vmul.f32 %v1343, %v1342
      %v1345 = vmul.f32 %v1339, %v1238
      %v1346 = vadd.f32 %v1344, %v1345
      %v1347 = vstv %s1239
      %vm1348 = vcmp.lt.s32.totalorder %v1347, %v88
      %v1349 = vsel %vm1348, 1, 0
      %1350 = vset.pattern.permute.xlu0 0
      %1351 = vperm.xlu0 %1350, %v1349
      %v1352 = vpop.permute.xlu0 %1351
      %vm1353 = vcmp.eq.s32.totalorder %v1352, 1
      %v1354 = vsel %vm1353, %v1346, %v1238
      %s1355 = sadd.s32 %s106, 7
      %s1356 = scalar_lea.vmem [#allocation2], 168
      %v1357 = vld [vmem:[%s1356] sm:$0xff]
      %v1358 = vld [vmem:[%s1356 + $0x8] sm:$0xff]
      %v1359 = vld [vmem:[%s1356 + $0x10] sm:$0xff]
      %v1360 = vpack.c.bf16 %v1354, %v1354
      %1361 = vmatprep.subr.bf16.mxu0 %v523
      %1362 = vmatpush1.bf16.msra.mxu0 %v522
      %1363 = vmatprep.subr.bf16.mxu0 %v520
      %1364 = vmatpush1.bf16.msra.mxu0 %v519
      %1365 = vmatprep.subr.bf16.mxu0 %v517
      %1366 = vmatpush1.bf16.msra.mxu0 %v516
      %1367 = vmatprep.subr.bf16.mxu0 %v514
      %1368 = vmatpush1.bf16.msra.mxu0 %v513
      %1369 = vmatprep.subr.bf16.mxu0 %v511
      %1370 = vmatpush1.bf16.msra.mxu0 %v510
      %1371 = vmatprep.subr.bf16.mxu0 %v508
      %1372 = vmatpush1.bf16.msra.mxu0 %v507
      %1373 = vmatprep.subr.bf16.mxu0 %v505
      %1374 = vmatpush1.bf16.msra.mxu0 %v504
      %1375 = vmatprep.subr.bf16.mxu0 %v502
      %1376 = vmatpush1.bf16.msra.mxu0 %v501
      %1377 = vmatprep.subr.bf16.mxu0 0
      %1378 = vmatpush2.bf16.msra.mxu0 0
      %1379 = vmatprep.subr.bf16.mxu0 0
      %1380 = vmatpush2.bf16.msra.mxu0 0
      %1381 = vmatprep.subr.bf16.mxu0 0
      %1382 = vmatpush2.bf16.msra.mxu0 0
      %1383 = vmatprep.subr.bf16.mxu0 0
      %1384 = vmatpush2.bf16.msra.mxu0 0
      %1385 = vmatprep.subr.bf16.mxu0 0
      %1386 = vmatpush2.bf16.msra.mxu0 0
      %1387 = vmatprep.subr.bf16.mxu0 0
      %1388 = vmatpush2.bf16.msra.mxu0 0
      %1389 = vmatprep.subr.bf16.mxu0 0
      %1390 = vmatpush2.bf16.msra.mxu0 0
      %1391 = vmatprep.subr.bf16.mxu0 0
      %1392 = vmatpush2.bf16.msra.mxu0 0
      %1393 = vmatprep.mubr.bf16.mxu0 0
      %1394 = vmatmul.mubr.bf16.gmra.mxu0 %v1360
      %v1395 = vpop.f32.mrf.mxu0
      %v1396 = vadd.f32 %v409, %v1395
      %v1397 = vpop.f32.mrf.mxu0
      %v1398 = vadd.f32 %v413, %v1397
      %v1399 = vpop.f32.mrf.mxu0
      %v1400 = vpop.f32.mrf.mxu0
      %1401 = vdwg.mxu0
      %1402 = vmatprep.subr.bf16.mxu0 0
      %1403 = vmatpush1.bf16.msra.mxu0 %v524
      %1404 = vmatprep.subr.bf16.mxu0 0
      %1405 = vmatpush1.bf16.msra.mxu0 %v521
      %1406 = vmatprep.subr.bf16.mxu0 0
      %1407 = vmatpush1.bf16.msra.mxu0 %v518
      %1408 = vmatprep.subr.bf16.mxu0 0
      %1409 = vmatpush1.bf16.msra.mxu0 %v515
      %1410 = vmatprep.subr.bf16.mxu0 0
      %1411 = vmatpush1.bf16.msra.mxu0 %v512
      %1412 = vmatprep.subr.bf16.mxu0 0
      %1413 = vmatpush1.bf16.msra.mxu0 %v509
      %1414 = vmatprep.subr.bf16.mxu0 0
      %1415 = vmatpush1.bf16.msra.mxu0 %v506
      %1416 = vmatprep.subr.bf16.mxu0 0
      %1417 = vmatpush1.bf16.msra.mxu0 %v503
      %1418 = vmatprep.subr.bf16.mxu0 0
      %1419 = vmatpush2.bf16.msra.mxu0 0
      %1420 = vmatprep.subr.bf16.mxu0 0
      %1421 = vmatpush2.bf16.msra.mxu0 0
      %1422 = vmatprep.subr.bf16.mxu0 0
      %1423 = vmatpush2.bf16.msra.mxu0 0
      %1424 = vmatprep.subr.bf16.mxu0 0
      %1425 = vmatpush2.bf16.msra.mxu0 0
      %1426 = vmatprep.subr.bf16.mxu0 0
      %1427 = vmatpush2.bf16.msra.mxu0 0
      %1428 = vmatprep.subr.bf16.mxu0 0
      %1429 = vmatpush2.bf16.msra.mxu0 0
      %1430 = vmatprep.subr.bf16.mxu0 0
      %1431 = vmatpush2.bf16.msra.mxu0 0
      %1432 = vmatprep.subr.bf16.mxu0 0
      %1433 = vmatpush2.bf16.msra.mxu0 0
      %1434 = vmatprep.mubr.bf16.mxu0 0
      %1435 = vmatmul.mubr.bf16.gmra.mxu0 %v1360
      %v1436 = vpop.f32.mrf.mxu0
      %v1437 = vadd.f32 %v417, %v1436
      %v1438 = vpop.f32.mrf.mxu0
      %v1439 = vpop.f32.mrf.mxu0
      %v1440 = vpop.f32.mrf.mxu0
      %1441 = vdwg.mxu0
      %v1442 = vadd.f32 %v1357, %v1396
      %v1443 = vxor.u32 %v1442, 2147483648
      %v1444 = vmul.f32 %v1443, 1.442695
      %v1445 = vpow.pop %v1444
      %v1446 = vadd.f32 %v1445, 1.0
      %v1447 = vrcp.pop %v1446
      %v1448 = vmul.f32 1.0, %v1447
      %v1449 = vadd.f32 %v1358, %v1398
      %v1450 = vxor.u32 %v1449, 2147483648
      %v1451 = vmul.f32 %v1450, 1.442695
      %v1452 = vpow.pop %v1451
      %v1453 = vadd.f32 %v1452, 1.0
      %v1454 = vrcp.pop %v1453
      %v1455 = vmul.f32 1.0, %v1454
      %v1456 = vmul.f32 %v1448, %v1437
      %v1457 = vadd.f32 %v1359, %v1456
      %v1458 = vtanh.pop %v1457
      %v1459 = vsub.f32 1.0, %v1455
      %v1460 = vmul.f32 %v1459, %v1458
      %v1461 = vmul.f32 %v1455, %v1354
      %v1462 = vadd.f32 %v1460, %v1461
      %v1463 = vstv %s1355
      %vm1464 = vcmp.lt.s32.totalorder %v1463, %v88
      %v1465 = vsel %vm1464, 1, 0
      %1466 = vset.pattern.permute.xlu0 0
      %1467 = vperm.xlu0 %1466, %v1465
      %v1468 = vpop.permute.xlu0 %1467
      %vm1469 = vcmp.eq.s32.totalorder %v1468, 1
      %v1470 = vsel %vm1469, %v1462, %v1354
      %1471 = vst [vmem:[#allocation3] sm:$0xff] %v1470
    $region54: #{tpu_custom_call.1} parent=1 // loop_footer
      %s103 = sadd.s32 %s101, 1
    $region55: #{tpu_custom_call.1} parent=1 // loop_footer_branch
      %100 = sbr.rel target = $region51
    $region56: #{tpu_custom_call.1} parent=1 // loop_exit
      _
    %v1472 = vld [vmem:[#allocation3] sm:$0xff]
    %v1473 = vpack.c.bf16 %v1472, %v1472
    %v1474 = vld [vmem:[#allocation12] sm:$0xf]
    %v1475 = vld [vmem:[#allocation12 + $0x4] sm:$0xf]
    %v1476 = vld [vmem:[#allocation12 + $0x8] sm:$0xf]
    %v1477 = vld [vmem:[#allocation12 + $0xc] sm:$0xf]
    %v1478 = vld [vmem:[#allocation12 + $0x10] sm:$0xf]
    %v1479 = vld [vmem:[#allocation12 + $0x14] sm:$0xf]
    %v1480 = vld [vmem:[#allocation12 + $0x18] sm:$0xf]
    %v1481 = vld [vmem:[#allocation12 + $0x1c] sm:$0xf]
    %v1482 = vld [vmem:[#allocation12 + $0x20] sm:$0xf]
    %v1483 = vld [vmem:[#allocation12 + $0x24] sm:$0xf]
    %v1484 = vld [vmem:[#allocation12 + $0x28] sm:$0xf]
    %v1485 = vld [vmem:[#allocation12 + $0x2c] sm:$0xf]
    %v1486 = vld [vmem:[#allocation12 + $0x30] sm:$0xf]
    %v1487 = vld [vmem:[#allocation12 + $0x34] sm:$0xf]
    %v1488 = vld [vmem:[#allocation12 + $0x38] sm:$0xf]
    %v1489 = vld [vmem:[#allocation12 + $0x3c] sm:$0xf]
    %v1490 = vld [vmem:[%s8] sm:$0x1]
    %v1492 = vlaneseq
    %v1493 = vshrl.u32 %v1492, 7
    %v1494 = vsub.s32 0, %v1493
    %v1495 = vrot.slane %v1490, %v1494
    %v1513 = vunpack.c.l.b16 %v1474
    %v1514 = vunpack.c.l.b16 %v1475
    %v1515 = vunpack.c.l.b16 %v1476
    %v1516 = vunpack.c.l.b16 %v1477
    %v1517 = vunpack.c.l.b16 %v1478
    %v1518 = vunpack.c.l.b16 %v1479
    %v1519 = vunpack.c.l.b16 %v1480
    %v1520 = vunpack.c.l.b16 %v1481
    %v1521 = vunpack.c.l.b16 %v1482
    %v1522 = vunpack.c.l.b16 %v1483
    %v1523 = vunpack.c.l.b16 %v1484
    %v1524 = vunpack.c.l.b16 %v1485
    %v1525 = vunpack.c.l.b16 %v1486
    %v1526 = vunpack.c.l.b16 %v1487
    %v1527 = vunpack.c.l.b16 %v1488
    %v1528 = vunpack.c.l.b16 %v1489
    %v1529 = vpack.c.b16 %v1514, %v1513
    %v1530 = vpack.c.b16 %v1516, %v1515
    %v1531 = vpack.c.b16 %v1518, %v1517
    %v1532 = vpack.c.b16 %v1520, %v1519
    %v1533 = vpack.c.b16 %v1522, %v1521
    %v1534 = vpack.c.b16 %v1524, %v1523
    %v1535 = vpack.c.b16 %v1526, %v1525
    %v1536 = vpack.c.b16 %v1528, %v1527
    %1545 = vmatprep.subr.bf16.mxu0 0
    %1546 = vmatpush1.bf16.msra.mxu0 %v1536
    %1547 = vmatprep.subr.bf16.mxu0 0
    %1548 = vmatpush1.bf16.msra.mxu0 %v1535
    %1549 = vmatprep.subr.bf16.mxu0 0
    %1550 = vmatpush1.bf16.msra.mxu0 %v1534
    %1551 = vmatprep.subr.bf16.mxu0 0
    %1552 = vmatpush1.bf16.msra.mxu0 %v1533
    %1553 = vmatprep.subr.bf16.mxu0 0
    %1554 = vmatpush1.bf16.msra.mxu0 %v1532
    %1555 = vmatprep.subr.bf16.mxu0 0
    %1556 = vmatpush1.bf16.msra.mxu0 %v1531
    %1557 = vmatprep.subr.bf16.mxu0 0
    %1558 = vmatpush1.bf16.msra.mxu0 %v1530
    %1559 = vmatprep.subr.bf16.mxu0 0
    %1560 = vmatpush1.bf16.msra.mxu0 %v1529
    %1561 = vmatprep.subr.bf16.mxu0 0
    %1562 = vmatpush2.bf16.msra.mxu0 0
    %1563 = vmatprep.subr.bf16.mxu0 0
    %1564 = vmatpush2.bf16.msra.mxu0 0
    %1565 = vmatprep.subr.bf16.mxu0 0
    %1566 = vmatpush2.bf16.msra.mxu0 0
    %1567 = vmatprep.subr.bf16.mxu0 0
    %1568 = vmatpush2.bf16.msra.mxu0 0
    %1569 = vmatprep.subr.bf16.mxu0 0
    %1570 = vmatpush2.bf16.msra.mxu0 0
    %1571 = vmatprep.subr.bf16.mxu0 0
    %1572 = vmatpush2.bf16.msra.mxu0 0
    %1573 = vmatprep.subr.bf16.mxu0 0
    %1574 = vmatpush2.bf16.msra.mxu0 0
    %1575 = vmatprep.subr.bf16.mxu0 0
    %1576 = vmatpush2.bf16.msra.mxu0 0
    %1577 = vmatprep.mubr.bf16.mxu0 0
    %1578 = vmatmul.mubr.bf16.gmra.mxu0 %v1473
    %v1579 = vpop.f32.mrf.mxu0
    %v1580 = vadd.f32 %v1495, %v1579
    %v1581 = vpop.f32.mrf.mxu0
    %v1582 = vpop.f32.mrf.mxu0
    %v1583 = vpop.f32.mrf.mxu0
    %1584 = vdwg.mxu0
    %1585 = vst [vmem:[#allocation14] sm:$0xff] %v1580
    // Predicated region
    $region57: #{tpu_custom_call.1} parent=1 // pred_check
      _
    $region58: #{tpu_custom_call.1} parent=1 // pred_check_branch
      %1587 = sbr.rel (0) target = $region60
    $region59: #{tpu_custom_call.1} parent=1 // pred_region
      %s1589 = ssub.s32 128, 128
      %1590 = vsyncadd [#allocation8], %s1589
      %s1592 = sshll.u32 [#allocation14], 4
      %s1593 = int_to_ptr.vmem [resolvable:$true] %s1592
      %1595 = dma.vmem_to_hbm [thread:$0]  %s1593, 128, %s9, [#allocation8]
    $region60: #{tpu_custom_call.1} parent=1 // pred_fallthru
      _
    // Predicated region
    $region61: #{tpu_custom_call.1} parent=1 // pred_check
      _
    $region62: #{tpu_custom_call.1} parent=1 // pred_check_branch
      %1597 = sbr.rel (0) target = $region64
    $region63: #{tpu_custom_call.1} parent=1 // pred_region
      %1598 = dma.done [#allocation8], 128
    $region64: #{tpu_custom_call.1} parent=1 // pred_fallthru
      _
    %1599 = vsyncpa [#allocation7], 1
    %1600 = vsyncpa [#allocation10], 1
    %1601 = vsyncpa [#allocation13], 1
    %1602 = vsyncpa [#allocation8], 1

</llo_original>
